<compile_context>
chip_gen: v6e
topology: v6e:2x2x1
jax: 0.10.0
libtpu: 0.0.40
codegen_flags: <defaults>
</compile_context>

<pallas_src>
import functools
import numbers

import numpy as np
import jax
import jax.numpy as jnp
from jax.experimental import pallas as pl
from jax.experimental.pallas import tpu as pltpu


def make_gaussian_weights_1d(sigma, kernel_size, scale=True):
    """Per-axis 1D gaussian factors whose outer product equals the torch 2D kernel."""
    mean = (kernel_size - 1) / 2.0
    xs = np.arange(kernel_size, dtype=np.float32)
    gh = np.exp(-(((xs - mean) / sigma[0]) ** 2) / 2.0).astype(np.float32)  # rows / H axis
    gw = np.exp(-(((xs - mean) / sigma[1]) ** 2) / 2.0).astype(np.float32)  # cols / W axis
    if scale:
        # sum(outer(gh, gw)) == sum(gh)*sum(gw): normalizing each 1D factor is exact.
        gh = gh / gh.sum()
        gw = gw / gw.sum()
    return gh, gw


def make_gaussian_kernel(sigma, kernel_size, scale=True):
    """2D kernel, identical (up to fp rounding) to the torch __init__ construction."""
    gh, gw = make_gaussian_weights_1d(sigma, kernel_size, scale)
    return jnp.asarray(np.outer(gh, gw), dtype=jnp.float32)  # (K, K)


def _smooth_kernel(x_ref, o_ref, tmp_ref, *, wh, ww, K, Ho, Wo, thresh):
    # x_ref:   (Hp, Wp, TC)  zero-padded input, channels-last (channels on lane axis)
    # tmp_ref: (Ho, Wp, TC)  f32 VMEM scratch: result of the vertical (H) pass
    # o_ref:   (Ho, Wo, TC)  filtered output
    # wh / ww: tuples of Python float immediates (separable gaussian taps)

    # ---- vertical pass: K taps along H (leading axis -> pure address shifts) ----
    acc = wh[0] * x_ref[0:Ho, :, :]
    for ki in range(1, K):
        acc = acc + wh[ki] * x_ref[ki:ki + Ho, :, :]
    tmp_ref[...] = acc

    # ---- horizontal pass: K taps along W (sublane shifts, lanes untouched) ----
    out = ww[0] * tmp_ref[:, 0:Wo, :]
    for kj in range(1, K):
        out = out + ww[kj] * tmp_ref[:, kj:kj + Wo, :]

    # out[out < thresh] = 0 ; out.clamp_(0, 1)   (where is redundant for thresh <= 0)
    if thresh > 0.0:
        out = jnp.where(out < thresh, 0.0, out)
    o_ref[...] = jnp.clip(out, 0.0, 1.0).astype(o_ref.dtype)


def gaussian_smoothing(x, sigma, kernel_size=None, scale=True, thresh=0.0):
    """Forward pass of GaussianSmoothing. x: (N, C, H, W) float32."""
    if isinstance(sigma, numbers.Number):
        sigma = [float(sigma)] * 2
    if not kernel_size:
        # intent of the torch ctor: kernel_size = 2*3*sigma + 1
        kernel_size = int(2 * 3 * sigma[0] + 1)
    K = int(kernel_size)
    p = K // 2

    wh_np, ww_np = make_gaussian_weights_1d(sigma, K, scale)
    wh = tuple(float(v) for v in wh_np)
    ww = tuple(float(v) for v in ww_np)

    N, C, H, W = x.shape
    NC = N * C
    Hp, Wp = H + 2 * p, W + 2 * p
    Ho, Wo = Hp - K + 1, Wp - K + 1   # == H, W for odd K; matches F.conv2d(padding=p)

    # Channel tiling: channels are the lane axis. For NC >= 128 use a multiple-of-128
    # chunk sized to stay comfortably inside scoped VMEM; otherwise one full chunk.
    if NC >= 128:
        budget = 24 * 1024 * 1024
        per_chan = 4 * (2 * Hp * Wp + 2 * Ho * Wo + Ho * Wp)  # dbl-buffered in/out + scratch
        tc_fit = max(128, (budget // max(per_chan, 1)) // 128 * 128)
        nc_lanes = pl.cdiv(NC, 128) * 128
        TC = min(512, tc_fit, nc_lanes)
        NCp = pl.cdiv(NC, TC) * TC
    else:
        TC = NC
        NCp = NC
    n_chunks = NCp // TC

    # Channels-last + spatial zero pad (+ lane padding) in one fused XLA copy.
    xt = jnp.transpose(x.reshape(NC, H, W), (1, 2, 0))            # (H, W, NC)
    xp = jnp.pad(xt, ((p, p), (p, p), (0, NCp - NC)))             # (Hp, Wp, NCp)

    kern = functools.partial(_smooth_kernel, wh=wh, ww=ww, K=K, Ho=Ho, Wo=Wo,
                             thresh=float(thresh))
    cost = pl.CostEstimate(
        flops=2 * 2 * K * Ho * Wo * NCp,                          # two 1D passes, mul+add
        transcendentals=0,
        bytes_accessed=4 * (Hp * Wp * NCp + Ho * Wo * NCp),
    )

    out = pl.pallas_call(
        kern,
        out_shape=jax.ShapeDtypeStruct((Ho, Wo, NCp), x.dtype),
        grid=(n_chunks,),
        in_specs=[pl.BlockSpec((Hp, Wp, TC), lambda c: (0, 0, c))],
        out_specs=pl.BlockSpec((Ho, Wo, TC), lambda c: (0, 0, c)),
        scratch_shapes=[pltpu.VMEM((Ho, Wp, TC), jnp.float32)],
        compiler_params=pltpu.CompilerParams(
            dimension_semantics=("parallel",),
            vmem_limit_bytes=32 * 1024 * 1024,
        ),
        cost_estimate=cost,
    )(xp)

    out = jnp.transpose(out[:, :, :NC], (2, 0, 1)).reshape(N, C, Ho, Wo)
    return out


if __name__ == "__main__":
    key = jax.random.PRNGKey(0)
    N, C, H, W = 2, 4, 16, 16
    sigma = 1.0
    K = 5
    thresh = 0.0

    # include negative values so the thresholding / clamping paths are exercised
    x = jax.random.uniform(key, (N, C, H, W), jnp.float32, minval=-0.5, maxval=1.5)

    out = gaussian_smoothing(x, sigma=sigma, kernel_size=K, scale=True, thresh=thresh)
    out = jax.block_until_ready(out)

    # pure-JAX reference (depthwise conv, groups=C), same semantics as torch forward
    p = K // 2
    w2d = make_gaussian_kernel([sigma, sigma], K, scale=True)
    w_dw = jnp.broadcast_to(w2d[None, None], (C, 1, K, K))
    ref = jax.lax.conv_general_dilated(
        x, w_dw, window_strides=(1, 1), padding=[(p, p), (p, p)],
        dimension_numbers=("NCHW", "OIHW", "NCHW"), feature_group_count=C)
    ref = jnp.where(ref < thresh, 0.0, ref)
    ref = jnp.clip(ref, 0.0, 1.0)

    assert out.shape == ref.shape and out.dtype == x.dtype
    assert jnp.allclose(out, ref, atol=1e-5, rtol=1e-5), "mismatch vs depthwise-conv reference"
    print("KERNEL_OK")
</pallas_src>

<mosaic_0001>
module attributes {stable_mosaic.version = 11 : i64} {
  func.func @_smooth_kernel(%arg0: i32, %arg1: memref<20x20x8xf32, #tpu.memory_space<vmem>>, %arg2: memref<16x16x8xf32, #tpu.memory_space<vmem>>, %arg3: memref<16x20x8xf32, #tpu.memory_space<vmem>>) attributes {dimension_semantics = [#tpu.dimension_semantics<parallel>], iteration_bounds = array<i64: 1>, scalar_prefetch = 0 : i64, scratch_operands = 1 : i64, tpu.core_type = #tpu.core_type<tc>, window_params = [{transform_indices = @transform_0, window_bounds = array<i64: 20, 20, 8>}, {transform_indices = @transform_1, window_bounds = array<i64: 16, 16, 8>}]} {
    %c0 = arith.constant 0 : index
    %c0_0 = arith.constant 0 : index
    %c0_1 = arith.constant 0 : index
    %0 = vector.load %arg1[%c0, %c0_0, %c0_1] : memref<20x20x8xf32, #tpu.memory_space<vmem>>, vector<16x20x8xf32>
    %cst = arith.constant 0.0544886887 : f32
    %1 = vector.broadcast %cst : f32 to vector<16x20x8xf32>
    %2 = arith.mulf %1, %0 : vector<16x20x8xf32>
    %c1 = arith.constant 1 : index
    %c0_2 = arith.constant 0 : index
    %c0_3 = arith.constant 0 : index
    %3 = vector.load %arg1[%c1, %c0_2, %c0_3] : memref<20x20x8xf32, #tpu.memory_space<vmem>>, vector<16x20x8xf32>
    %cst_4 = arith.constant 0.244201362 : f32
    %4 = vector.broadcast %cst_4 : f32 to vector<16x20x8xf32>
    %5 = arith.mulf %4, %3 : vector<16x20x8xf32>
    %6 = arith.addf %2, %5 : vector<16x20x8xf32>
    %c2 = arith.constant 2 : index
    %c0_5 = arith.constant 0 : index
    %c0_6 = arith.constant 0 : index
    %7 = vector.load %arg1[%c2, %c0_5, %c0_6] : memref<20x20x8xf32, #tpu.memory_space<vmem>>, vector<16x20x8xf32>
    %cst_7 = arith.constant 0.402619958 : f32
    %8 = vector.broadcast %cst_7 : f32 to vector<16x20x8xf32>
    %9 = arith.mulf %8, %7 : vector<16x20x8xf32>
    %10 = arith.addf %6, %9 : vector<16x20x8xf32>
    %c3 = arith.constant 3 : index
    %c0_8 = arith.constant 0 : index
    %c0_9 = arith.constant 0 : index
    %11 = vector.load %arg1[%c3, %c0_8, %c0_9] : memref<20x20x8xf32, #tpu.memory_space<vmem>>, vector<16x20x8xf32>
    %cst_10 = arith.constant 0.244201362 : f32
    %12 = vector.broadcast %cst_10 : f32 to vector<16x20x8xf32>
    %13 = arith.mulf %12, %11 : vector<16x20x8xf32>
    %14 = arith.addf %10, %13 : vector<16x20x8xf32>
    %c4 = arith.constant 4 : index
    %c0_11 = arith.constant 0 : index
    %c0_12 = arith.constant 0 : index
    %15 = vector.load %arg1[%c4, %c0_11, %c0_12] : memref<20x20x8xf32, #tpu.memory_space<vmem>>, vector<16x20x8xf32>
    %cst_13 = arith.constant 0.0544886887 : f32
    %16 = vector.broadcast %cst_13 : f32 to vector<16x20x8xf32>
    %17 = arith.mulf %16, %15 : vector<16x20x8xf32>
    %18 = arith.addf %14, %17 : vector<16x20x8xf32>
    %c0_14 = arith.constant 0 : index
    %c0_15 = arith.constant 0 : index
    %c0_16 = arith.constant 0 : index
    %19 = vector.load %arg3[%c0_14, %c0_15, %c0_16] : memref<16x20x8xf32, #tpu.memory_space<vmem>>, vector<16x20x8xf32>
    tpu.vector_store %arg3[%c0_14, %c0_15, %c0_16], %18 {strides = array<i32>} : memref<16x20x8xf32, #tpu.memory_space<vmem>>, vector<16x20x8xf32>,
    %c0_17 = arith.constant 0 : index
    %c0_18 = arith.constant 0 : index
    %c0_19 = arith.constant 0 : index
    %20 = vector.load %arg3[%c0_17, %c0_18, %c0_19] : memref<16x20x8xf32, #tpu.memory_space<vmem>>, vector<16x16x8xf32>
    %cst_20 = arith.constant 0.0544886887 : f32
    %21 = vector.broadcast %cst_20 : f32 to vector<16x16x8xf32>
    %22 = arith.mulf %21, %20 : vector<16x16x8xf32>
    %c0_21 = arith.constant 0 : index
    %c1_22 = arith.constant 1 : index
    %c0_23 = arith.constant 0 : index
    %23 = vector.load %arg3[%c0_21, %c1_22, %c0_23] : memref<16x20x8xf32, #tpu.memory_space<vmem>>, vector<16x16x8xf32>
    %cst_24 = arith.constant 0.244201362 : f32
    %24 = vector.broadcast %cst_24 : f32 to vector<16x16x8xf32>
    %25 = arith.mulf %24, %23 : vector<16x16x8xf32>
    %26 = arith.addf %22, %25 : vector<16x16x8xf32>
    %c0_25 = arith.constant 0 : index
    %c2_26 = arith.constant 2 : index
    %c0_27 = arith.constant 0 : index
    %27 = vector.load %arg3[%c0_25, %c2_26, %c0_27] : memref<16x20x8xf32, #tpu.memory_space<vmem>>, vector<16x16x8xf32>
    %cst_28 = arith.constant 0.402619958 : f32
    %28 = vector.broadcast %cst_28 : f32 to vector<16x16x8xf32>
    %29 = arith.mulf %28, %27 : vector<16x16x8xf32>
    %30 = arith.addf %26, %29 : vector<16x16x8xf32>
    %c0_29 = arith.constant 0 : index
    %c3_30 = arith.constant 3 : index
    %c0_31 = arith.constant 0 : index
    %31 = vector.load %arg3[%c0_29, %c3_30, %c0_31] : memref<16x20x8xf32, #tpu.memory_space<vmem>>, vector<16x16x8xf32>
    %cst_32 = arith.constant 0.244201362 : f32
    %32 = vector.broadcast %cst_32 : f32 to vector<16x16x8xf32>
    %33 = arith.mulf %32, %31 : vector<16x16x8xf32>
    %34 = arith.addf %30, %33 : vector<16x16x8xf32>
    %c0_33 = arith.constant 0 : index
    %c4_34 = arith.constant 4 : index
    %c0_35 = arith.constant 0 : index
    %35 = vector.load %arg3[%c0_33, %c4_34, %c0_35] : memref<16x20x8xf32, #tpu.memory_space<vmem>>, vector<16x16x8xf32>
    %cst_36 = arith.constant 0.0544886887 : f32
    %36 = vector.broadcast %cst_36 : f32 to vector<16x16x8xf32>
    %37 = arith.mulf %36, %35 : vector<16x16x8xf32>
    %38 = arith.addf %34, %37 : vector<16x16x8xf32>
    %cst_37 = arith.constant 0.000000e+00 : f32
    %cst_38 = arith.constant 1.000000e+00 : f32
    %39 = vector.broadcast %cst_37 : f32 to vector<16x16x8xf32>
    %40 = arith.maximumf %39, %38 : vector<16x16x8xf32>
    %41 = vector.broadcast %cst_38 : f32 to vector<16x16x8xf32>
    %42 = arith.minimumf %41, %40 : vector<16x16x8xf32>
    %c0_39 = arith.constant 0 : index
    %c0_40 = arith.constant 0 : index
    %c0_41 = arith.constant 0 : index
    %43 = vector.load %arg2[%c0_39, %c0_40, %c0_41] : memref<16x16x8xf32, #tpu.memory_space<vmem>>, vector<16x16x8xf32>
    tpu.vector_store %arg2[%c0_39, %c0_40, %c0_41], %42 {strides = array<i32>} : memref<16x16x8xf32, #tpu.memory_space<vmem>>, vector<16x16x8xf32>,
    return
  }
  func.func @transform_0(%arg0: i32) -> (i32, i32, i32) {
    %c0_i32 = arith.constant 0 : i32
    %c0_i32_0 = arith.constant 0 : i32
    %c0_i32_1 = arith.constant 0 : i32
    return %c0_i32, %c0_i32_0, %arg0 : i32, i32, i32
  }
  func.func @transform_1(%arg0: i32) -> (i32, i32, i32) {
    %c0_i32 = arith.constant 0 : i32
    %c0_i32_0 = arith.constant 0 : i32
    %c0_i32_1 = arith.constant 0 : i32
    return %c0_i32, %c0_i32_0, %arg0 : i32, i32, i32
  }
}

</mosaic_0001>

<llo_original>
// kernel: tpu_custom_call.1
$region0: #{tpu_custom_call.1}
  #allocation0 [shape = 'u32[]', space=smem, size = 0x4, offset = 0x4, fixed_abs, tag = 'smem constant byte address 0x4 - core index']
  #allocation1 [shape = 'u32[144,128]{1,0:T(1,128)}', space=vmem, size = 0x12000, scoped, tag = 'internal scratch']
  #allocation2 [shape = 'f32[16,20,8]{2,1,0:T(8,128)}', space=vmem, size = 0x30000, scoped, tag = 'scratch operand']
  %s0 = inlined_call_operand.vmem [shape: f32[20,20,8], index: 0, kind: input, shape index: {}]
  %s1 = inlined_call_operand.vmem [shape: f32[16,16,8], index: 1, kind: output, shape index: {}]
  %s2 = sld [smem:[#allocation0]]
  $region14: #{tpu_custom_call.1} parent=0
    _
  %s4 = ssub.s32 1, %s2
  %s5 = scalar_select 0, %s4, %s2
  // Predicated region
  $region2: #{tpu_custom_call.1} parent=0 // pred_check
    _
  $region3: #{tpu_custom_call.1} parent=0 // pred_check_branch
    %7 = sbr.rel (0) target = $region5
  $region4: #{tpu_custom_call.1} parent=0 // pred_region
    _
  $region5: #{tpu_custom_call.1} parent=0 // pred_fallthru
    _
  %v8 = vld [vmem:[%s0] sm:$0xff]
  %v9 = vld [vmem:[%s0 + $0x8] sm:$0xff]
  %v10 = vld [vmem:[%s0 + $0x10] sm:$0xf]
  %v11 = vld [vmem:[%s0 + $0x18] sm:$0xff]
  %v12 = vld [vmem:[%s0 + $0x20] sm:$0xff]
  %v13 = vld [vmem:[%s0 + $0x28] sm:$0xf]
  %v14 = vld [vmem:[%s0 + $0x30] sm:$0xff]
  %v15 = vld [vmem:[%s0 + $0x38] sm:$0xff]
  %v16 = vld [vmem:[%s0 + $0x40] sm:$0xf]
  %v17 = vld [vmem:[%s0 + $0x48] sm:$0xff]
  %v18 = vld [vmem:[%s0 + $0x50] sm:$0xff]
  %v19 = vld [vmem:[%s0 + $0x58] sm:$0xf]
  %v20 = vld [vmem:[%s0 + $0x60] sm:$0xff]
  %v21 = vld [vmem:[%s0 + $0x68] sm:$0xff]
  %v22 = vld [vmem:[%s0 + $0x70] sm:$0xf]
  %v23 = vld [vmem:[%s0 + $0x78] sm:$0xff]
  %v24 = vld [vmem:[%s0 + $0x80] sm:$0xff]
  %v25 = vld [vmem:[%s0 + $0x88] sm:$0xf]
  %v26 = vld [vmem:[%s0 + $0x90] sm:$0xff]
  %v27 = vld [vmem:[%s0 + $0x98] sm:$0xff]
  %v28 = vld [vmem:[%s0 + $0xa0] sm:$0xf]
  %v29 = vld [vmem:[%s0 + $0xa8] sm:$0xff]
  %v30 = vld [vmem:[%s0 + $0xb0] sm:$0xff]
  %v31 = vld [vmem:[%s0 + $0xb8] sm:$0xf]
  %v32 = vld [vmem:[%s0 + $0xc0] sm:$0xff]
  %v33 = vld [vmem:[%s0 + $0xc8] sm:$0xff]
  %v34 = vld [vmem:[%s0 + $0xd0] sm:$0xf]
  %v35 = vld [vmem:[%s0 + $0xd8] sm:$0xff]
  %v36 = vld [vmem:[%s0 + $0xe0] sm:$0xff]
  %v37 = vld [vmem:[%s0 + $0xe8] sm:$0xf]
  %v38 = vld [vmem:[%s0 + $0xf0] sm:$0xff]
  %v39 = vld [vmem:[%s0 + $0xf8] sm:$0xff]
  %v40 = vld [vmem:[%s0 + $0x100] sm:$0xf]
  %v41 = vld [vmem:[%s0 + $0x108] sm:$0xff]
  %v42 = vld [vmem:[%s0 + $0x110] sm:$0xff]
  %v43 = vld [vmem:[%s0 + $0x118] sm:$0xf]
  %v44 = vld [vmem:[%s0 + $0x120] sm:$0xff]
  %v45 = vld [vmem:[%s0 + $0x128] sm:$0xff]
  %v46 = vld [vmem:[%s0 + $0x130] sm:$0xf]
  %v47 = vld [vmem:[%s0 + $0x138] sm:$0xff]
  %v48 = vld [vmem:[%s0 + $0x140] sm:$0xff]
  %v49 = vld [vmem:[%s0 + $0x148] sm:$0xf]
  %v50 = vld [vmem:[%s0 + $0x150] sm:$0xff]
  %v51 = vld [vmem:[%s0 + $0x158] sm:$0xff]
  %v52 = vld [vmem:[%s0 + $0x160] sm:$0xf]
  %v53 = vld [vmem:[%s0 + $0x168] sm:$0xff]
  %v54 = vld [vmem:[%s0 + $0x170] sm:$0xff]
  %v55 = vld [vmem:[%s0 + $0x178] sm:$0xf]
  %v56 = vmul.f32 %v8, 0.05448869
  %v57 = vmul.f32 %v9, 0.05448869
  %v58 = vmul.f32 %v10, 0.05448869
  %v59 = vmul.f32 %v11, 0.05448869
  %v60 = vmul.f32 %v12, 0.05448869
  %v61 = vmul.f32 %v13, 0.05448869
  %v62 = vmul.f32 %v14, 0.05448869
  %v63 = vmul.f32 %v15, 0.05448869
  %v64 = vmul.f32 %v16, 0.05448869
  %v65 = vmul.f32 %v17, 0.05448869
  %v66 = vmul.f32 %v18, 0.05448869
  %v67 = vmul.f32 %v19, 0.05448869
  %v68 = vmul.f32 %v20, 0.05448869
  %v69 = vmul.f32 %v21, 0.05448869
  %v70 = vmul.f32 %v22, 0.05448869
  %v71 = vmul.f32 %v23, 0.05448869
  %v72 = vmul.f32 %v24, 0.05448869
  %v73 = vmul.f32 %v25, 0.05448869
  %v74 = vmul.f32 %v26, 0.05448869
  %v75 = vmul.f32 %v27, 0.05448869
  %v76 = vmul.f32 %v28, 0.05448869
  %v77 = vmul.f32 %v29, 0.05448869
  %v78 = vmul.f32 %v30, 0.05448869
  %v79 = vmul.f32 %v31, 0.05448869
  %v80 = vmul.f32 %v32, 0.05448869
  %v81 = vmul.f32 %v33, 0.05448869
  %v82 = vmul.f32 %v34, 0.05448869
  %v83 = vmul.f32 %v35, 0.05448869
  %v84 = vmul.f32 %v36, 0.05448869
  %v85 = vmul.f32 %v37, 0.05448869
  %v86 = vmul.f32 %v38, 0.05448869
  %v87 = vmul.f32 %v39, 0.05448869
  %v88 = vmul.f32 %v40, 0.05448869
  %v89 = vmul.f32 %v41, 0.05448869
  %v90 = vmul.f32 %v42, 0.05448869
  %v91 = vmul.f32 %v43, 0.05448869
  %v92 = vmul.f32 %v44, 0.05448869
  %v93 = vmul.f32 %v45, 0.05448869
  %v94 = vmul.f32 %v46, 0.05448869
  %v95 = vmul.f32 %v47, 0.05448869
  %v96 = vmul.f32 %v48, 0.05448869
  %v97 = vmul.f32 %v49, 0.05448869
  %v98 = vmul.f32 %v50, 0.05448869
  %v99 = vmul.f32 %v51, 0.05448869
  %v100 = vmul.f32 %v52, 0.05448869
  %v101 = vmul.f32 %v53, 0.05448869
  %v102 = vmul.f32 %v54, 0.05448869
  %v103 = vmul.f32 %v55, 0.05448869
  %s104 = scalar_lea.vmem %s0, 24
  %v105 = vld [vmem:[%s104] sm:$0xff]
  %v106 = vld [vmem:[%s104 + $0x8] sm:$0xff]
  %v107 = vld [vmem:[%s104 + $0x10] sm:$0xf]
  %v108 = vld [vmem:[%s104 + $0x18] sm:$0xff]
  %v109 = vld [vmem:[%s104 + $0x20] sm:$0xff]
  %v110 = vld [vmem:[%s104 + $0x28] sm:$0xf]
  %v111 = vld [vmem:[%s104 + $0x30] sm:$0xff]
  %v112 = vld [vmem:[%s104 + $0x38] sm:$0xff]
  %v113 = vld [vmem:[%s104 + $0x40] sm:$0xf]
  %v114 = vld [vmem:[%s104 + $0x48] sm:$0xff]
  %v115 = vld [vmem:[%s104 + $0x50] sm:$0xff]
  %v116 = vld [vmem:[%s104 + $0x58] sm:$0xf]
  %v117 = vld [vmem:[%s104 + $0x60] sm:$0xff]
  %v118 = vld [vmem:[%s104 + $0x68] sm:$0xff]
  %v119 = vld [vmem:[%s104 + $0x70] sm:$0xf]
  %v120 = vld [vmem:[%s104 + $0x78] sm:$0xff]
  %v121 = vld [vmem:[%s104 + $0x80] sm:$0xff]
  %v122 = vld [vmem:[%s104 + $0x88] sm:$0xf]
  %v123 = vld [vmem:[%s104 + $0x90] sm:$0xff]
  %v124 = vld [vmem:[%s104 + $0x98] sm:$0xff]
  %v125 = vld [vmem:[%s104 + $0xa0] sm:$0xf]
  %v126 = vld [vmem:[%s104 + $0xa8] sm:$0xff]
  %v127 = vld [vmem:[%s104 + $0xb0] sm:$0xff]
  %v128 = vld [vmem:[%s104 + $0xb8] sm:$0xf]
  %v129 = vld [vmem:[%s104 + $0xc0] sm:$0xff]
  %v130 = vld [vmem:[%s104 + $0xc8] sm:$0xff]
  %v131 = vld [vmem:[%s104 + $0xd0] sm:$0xf]
  %v132 = vld [vmem:[%s104 + $0xd8] sm:$0xff]
  %v133 = vld [vmem:[%s104 + $0xe0] sm:$0xff]
  %v134 = vld [vmem:[%s104 + $0xe8] sm:$0xf]
  %v135 = vld [vmem:[%s104 + $0xf0] sm:$0xff]
  %v136 = vld [vmem:[%s104 + $0xf8] sm:$0xff]
  %v137 = vld [vmem:[%s104 + $0x100] sm:$0xf]
  %v138 = vld [vmem:[%s104 + $0x108] sm:$0xff]
  %v139 = vld [vmem:[%s104 + $0x110] sm:$0xff]
  %v140 = vld [vmem:[%s104 + $0x118] sm:$0xf]
  %v141 = vld [vmem:[%s104 + $0x120] sm:$0xff]
  %v142 = vld [vmem:[%s104 + $0x128] sm:$0xff]
  %v143 = vld [vmem:[%s104 + $0x130] sm:$0xf]
  %v144 = vld [vmem:[%s104 + $0x138] sm:$0xff]
  %v145 = vld [vmem:[%s104 + $0x140] sm:$0xff]
  %v146 = vld [vmem:[%s104 + $0x148] sm:$0xf]
  %v147 = vld [vmem:[%s104 + $0x150] sm:$0xff]
  %v148 = vld [vmem:[%s104 + $0x158] sm:$0xff]
  %v149 = vld [vmem:[%s104 + $0x160] sm:$0xf]
  %v150 = vld [vmem:[%s104 + $0x168] sm:$0xff]
  %v151 = vld [vmem:[%s104 + $0x170] sm:$0xff]
  %v152 = vld [vmem:[%s104 + $0x178] sm:$0xf]
  %v153 = vmul.f32 %v105, 0.24420136
  %v154 = vmul.f32 %v106, 0.24420136
  %v155 = vmul.f32 %v107, 0.24420136
  %v156 = vmul.f32 %v108, 0.24420136
  %v157 = vmul.f32 %v109, 0.24420136
  %v158 = vmul.f32 %v110, 0.24420136
  %v159 = vmul.f32 %v111, 0.24420136
  %v160 = vmul.f32 %v112, 0.24420136
  %v161 = vmul.f32 %v113, 0.24420136
  %v162 = vmul.f32 %v114, 0.24420136
  %v163 = vmul.f32 %v115, 0.24420136
  %v164 = vmul.f32 %v116, 0.24420136
  %v165 = vmul.f32 %v117, 0.24420136
  %v166 = vmul.f32 %v118, 0.24420136
  %v167 = vmul.f32 %v119, 0.24420136
  %v168 = vmul.f32 %v120, 0.24420136
  %v169 = vmul.f32 %v121, 0.24420136
  %v170 = vmul.f32 %v122, 0.24420136
  %v171 = vmul.f32 %v123, 0.24420136
  %v172 = vmul.f32 %v124, 0.24420136
  %v173 = vmul.f32 %v125, 0.24420136
  %v174 = vmul.f32 %v126, 0.24420136
  %v175 = vmul.f32 %v127, 0.24420136
  %v176 = vmul.f32 %v128, 0.24420136
  %v177 = vmul.f32 %v129, 0.24420136
  %v178 = vmul.f32 %v130, 0.24420136
  %v179 = vmul.f32 %v131, 0.24420136
  %v180 = vmul.f32 %v132, 0.24420136
  %v181 = vmul.f32 %v133, 0.24420136
  %v182 = vmul.f32 %v134, 0.24420136
  %v183 = vmul.f32 %v135, 0.24420136
  %v184 = vmul.f32 %v136, 0.24420136
  %v185 = vmul.f32 %v137, 0.24420136
  %v186 = vmul.f32 %v138, 0.24420136
  %v187 = vmul.f32 %v139, 0.24420136
  %v188 = vmul.f32 %v140, 0.24420136
  %v189 = vmul.f32 %v141, 0.24420136
  %v190 = vmul.f32 %v142, 0.24420136
  %v191 = vmul.f32 %v143, 0.24420136
  %v192 = vmul.f32 %v144, 0.24420136
  %v193 = vmul.f32 %v145, 0.24420136
  %v194 = vmul.f32 %v146, 0.24420136
  %v195 = vmul.f32 %v147, 0.24420136
  %v196 = vmul.f32 %v148, 0.24420136
  %v197 = vmul.f32 %v149, 0.24420136
  %v198 = vmul.f32 %v150, 0.24420136
  %v199 = vmul.f32 %v151, 0.24420136
  %v200 = vmul.f32 %v152, 0.24420136
  %v201 = vadd.f32 %v56, %v153
  %v202 = vadd.f32 %v57, %v154
  %v203 = vadd.f32 %v58, %v155
  %v204 = vadd.f32 %v59, %v156
  %v205 = vadd.f32 %v60, %v157
  %v206 = vadd.f32 %v61, %v158
  %v207 = vadd.f32 %v62, %v159
  %v208 = vadd.f32 %v63, %v160
  %v209 = vadd.f32 %v64, %v161
  %v210 = vadd.f32 %v65, %v162
  %v211 = vadd.f32 %v66, %v163
  %v212 = vadd.f32 %v67, %v164
  %v213 = vadd.f32 %v68, %v165
  %v214 = vadd.f32 %v69, %v166
  %v215 = vadd.f32 %v70, %v167
  %v216 = vadd.f32 %v71, %v168
  %v217 = vadd.f32 %v72, %v169
  %v218 = vadd.f32 %v73, %v170
  %v219 = vadd.f32 %v74, %v171
  %v220 = vadd.f32 %v75, %v172
  %v221 = vadd.f32 %v76, %v173
  %v222 = vadd.f32 %v77, %v174
  %v223 = vadd.f32 %v78, %v175
  %v224 = vadd.f32 %v79, %v176
  %v225 = vadd.f32 %v80, %v177
  %v226 = vadd.f32 %v81, %v178
  %v227 = vadd.f32 %v82, %v179
  %v228 = vadd.f32 %v83, %v180
  %v229 = vadd.f32 %v84, %v181
  %v230 = vadd.f32 %v85, %v182
  %v231 = vadd.f32 %v86, %v183
  %v232 = vadd.f32 %v87, %v184
  %v233 = vadd.f32 %v88, %v185
  %v234 = vadd.f32 %v89, %v186
  %v235 = vadd.f32 %v90, %v187
  %v236 = vadd.f32 %v91, %v188
  %v237 = vadd.f32 %v92, %v189
  %v238 = vadd.f32 %v93, %v190
  %v239 = vadd.f32 %v94, %v191
  %v240 = vadd.f32 %v95, %v192
  %v241 = vadd.f32 %v96, %v193
  %v242 = vadd.f32 %v97, %v194
  %v243 = vadd.f32 %v98, %v195
  %v244 = vadd.f32 %v99, %v196
  %v245 = vadd.f32 %v100, %v197
  %v246 = vadd.f32 %v101, %v198
  %v247 = vadd.f32 %v102, %v199
  %v248 = vadd.f32 %v103, %v200
  %s249 = scalar_lea.vmem %s0, 48
  %v250 = vld [vmem:[%s249] sm:$0xff]
  %v251 = vld [vmem:[%s249 + $0x8] sm:$0xff]
  %v252 = vld [vmem:[%s249 + $0x10] sm:$0xf]
  %v253 = vld [vmem:[%s249 + $0x18] sm:$0xff]
  %v254 = vld [vmem:[%s249 + $0x20] sm:$0xff]
  %v255 = vld [vmem:[%s249 + $0x28] sm:$0xf]
  %v256 = vld [vmem:[%s249 + $0x30] sm:$0xff]
  %v257 = vld [vmem:[%s249 + $0x38] sm:$0xff]
  %v258 = vld [vmem:[%s249 + $0x40] sm:$0xf]
  %v259 = vld [vmem:[%s249 + $0x48] sm:$0xff]
  %v260 = vld [vmem:[%s249 + $0x50] sm:$0xff]
  %v261 = vld [vmem:[%s249 + $0x58] sm:$0xf]
  %v262 = vld [vmem:[%s249 + $0x60] sm:$0xff]
  %v263 = vld [vmem:[%s249 + $0x68] sm:$0xff]
  %v264 = vld [vmem:[%s249 + $0x70] sm:$0xf]
  %v265 = vld [vmem:[%s249 + $0x78] sm:$0xff]
  %v266 = vld [vmem:[%s249 + $0x80] sm:$0xff]
  %v267 = vld [vmem:[%s249 + $0x88] sm:$0xf]
  %v268 = vld [vmem:[%s249 + $0x90] sm:$0xff]
  %v269 = vld [vmem:[%s249 + $0x98] sm:$0xff]
  %v270 = vld [vmem:[%s249 + $0xa0] sm:$0xf]
  %v271 = vld [vmem:[%s249 + $0xa8] sm:$0xff]
  %v272 = vld [vmem:[%s249 + $0xb0] sm:$0xff]
  %v273 = vld [vmem:[%s249 + $0xb8] sm:$0xf]
  %v274 = vld [vmem:[%s249 + $0xc0] sm:$0xff]
  %v275 = vld [vmem:[%s249 + $0xc8] sm:$0xff]
  %v276 = vld [vmem:[%s249 + $0xd0] sm:$0xf]
  %v277 = vld [vmem:[%s249 + $0xd8] sm:$0xff]
  %v278 = vld [vmem:[%s249 + $0xe0] sm:$0xff]
  %v279 = vld [vmem:[%s249 + $0xe8] sm:$0xf]
  %v280 = vld [vmem:[%s249 + $0xf0] sm:$0xff]
  %v281 = vld [vmem:[%s249 + $0xf8] sm:$0xff]
  %v282 = vld [vmem:[%s249 + $0x100] sm:$0xf]
  %v283 = vld [vmem:[%s249 + $0x108] sm:$0xff]
  %v284 = vld [vmem:[%s249 + $0x110] sm:$0xff]
  %v285 = vld [vmem:[%s249 + $0x118] sm:$0xf]
  %v286 = vld [vmem:[%s249 + $0x120] sm:$0xff]
  %v287 = vld [vmem:[%s249 + $0x128] sm:$0xff]
  %v288 = vld [vmem:[%s249 + $0x130] sm:$0xf]
  %v289 = vld [vmem:[%s249 + $0x138] sm:$0xff]
  %v290 = vld [vmem:[%s249 + $0x140] sm:$0xff]
  %v291 = vld [vmem:[%s249 + $0x148] sm:$0xf]
  %v292 = vld [vmem:[%s249 + $0x150] sm:$0xff]
  %v293 = vld [vmem:[%s249 + $0x158] sm:$0xff]
  %v294 = vld [vmem:[%s249 + $0x160] sm:$0xf]
  %v295 = vld [vmem:[%s249 + $0x168] sm:$0xff]
  %v296 = vld [vmem:[%s249 + $0x170] sm:$0xff]
  %v297 = vld [vmem:[%s249 + $0x178] sm:$0xf]
  %v298 = vmul.f32 %v250, 0.40261996
  %v299 = vmul.f32 %v251, 0.40261996
  %v300 = vmul.f32 %v252, 0.40261996
  %v301 = vmul.f32 %v253, 0.40261996
  %v302 = vmul.f32 %v254, 0.40261996
  %v303 = vmul.f32 %v255, 0.40261996
  %v304 = vmul.f32 %v256, 0.40261996
  %v305 = vmul.f32 %v257, 0.40261996
  %v306 = vmul.f32 %v258, 0.40261996
  %v307 = vmul.f32 %v259, 0.40261996
  %v308 = vmul.f32 %v260, 0.40261996
  %v309 = vmul.f32 %v261, 0.40261996
  %v310 = vmul.f32 %v262, 0.40261996
  %v311 = vmul.f32 %v263, 0.40261996
  %v312 = vmul.f32 %v264, 0.40261996
  %v313 = vmul.f32 %v265, 0.40261996
  %v314 = vmul.f32 %v266, 0.40261996
  %v315 = vmul.f32 %v267, 0.40261996
  %v316 = vmul.f32 %v268, 0.40261996
  %v317 = vmul.f32 %v269, 0.40261996
  %v318 = vmul.f32 %v270, 0.40261996
  %v319 = vmul.f32 %v271, 0.40261996
  %v320 = vmul.f32 %v272, 0.40261996
  %v321 = vmul.f32 %v273, 0.40261996
  %v322 = vmul.f32 %v274, 0.40261996
  %v323 = vmul.f32 %v275, 0.40261996
  %v324 = vmul.f32 %v276, 0.40261996
  %v325 = vmul.f32 %v277, 0.40261996
  %v326 = vmul.f32 %v278, 0.40261996
  %v327 = vmul.f32 %v279, 0.40261996
  %v328 = vmul.f32 %v280, 0.40261996
  %v329 = vmul.f32 %v281, 0.40261996
  %v330 = vmul.f32 %v282, 0.40261996
  %v331 = vmul.f32 %v283, 0.40261996
  %v332 = vmul.f32 %v284, 0.40261996
  %v333 = vmul.f32 %v285, 0.40261996
  %v334 = vmul.f32 %v286, 0.40261996
  %v335 = vmul.f32 %v287, 0.40261996
  %v336 = vmul.f32 %v288, 0.40261996
  %v337 = vmul.f32 %v289, 0.40261996
  %v338 = vmul.f32 %v290, 0.40261996
  %v339 = vmul.f32 %v291, 0.40261996
  %v340 = vmul.f32 %v292, 0.40261996
  %v341 = vmul.f32 %v293, 0.40261996
  %v342 = vmul.f32 %v294, 0.40261996
  %v343 = vmul.f32 %v295, 0.40261996
  %v344 = vmul.f32 %v296, 0.40261996
  %v345 = vmul.f32 %v297, 0.40261996
  %v346 = vadd.f32 %v201, %v298
  %v347 = vadd.f32 %v202, %v299
  %v348 = vadd.f32 %v203, %v300
  %v349 = vadd.f32 %v204, %v301
  %v350 = vadd.f32 %v205, %v302
  %v351 = vadd.f32 %v206, %v303
  %v352 = vadd.f32 %v207, %v304
  %v353 = vadd.f32 %v208, %v305
  %v354 = vadd.f32 %v209, %v306
  %v355 = vadd.f32 %v210, %v307
  %v356 = vadd.f32 %v211, %v308
  %v357 = vadd.f32 %v212, %v309
  %v358 = vadd.f32 %v213, %v310
  %v359 = vadd.f32 %v214, %v311
  %v360 = vadd.f32 %v215, %v312
  %v361 = vadd.f32 %v216, %v313
  %v362 = vadd.f32 %v217, %v314
  %v363 = vadd.f32 %v218, %v315
  %v364 = vadd.f32 %v219, %v316
  %v365 = vadd.f32 %v220, %v317
  %v366 = vadd.f32 %v221, %v318
  %v367 = vadd.f32 %v222, %v319
  %v368 = vadd.f32 %v223, %v320
  %v369 = vadd.f32 %v224, %v321
  %v370 = vadd.f32 %v225, %v322
  %v371 = vadd.f32 %v226, %v323
  %v372 = vadd.f32 %v227, %v324
  %v373 = vadd.f32 %v228, %v325
  %v374 = vadd.f32 %v229, %v326
  %v375 = vadd.f32 %v230, %v327
  %v376 = vadd.f32 %v231, %v328
  %v377 = vadd.f32 %v232, %v329
  %v378 = vadd.f32 %v233, %v330
  %v379 = vadd.f32 %v234, %v331
  %v380 = vadd.f32 %v235, %v332
  %v381 = vadd.f32 %v236, %v333
  %v382 = vadd.f32 %v237, %v334
  %v383 = vadd.f32 %v238, %v335
  %v384 = vadd.f32 %v239, %v336
  %v385 = vadd.f32 %v240, %v337
  %v386 = vadd.f32 %v241, %v338
  %v387 = vadd.f32 %v242, %v339
  %v388 = vadd.f32 %v243, %v340
  %v389 = vadd.f32 %v244, %v341
  %v390 = vadd.f32 %v245, %v342
  %v391 = vadd.f32 %v246, %v343
  %v392 = vadd.f32 %v247, %v344
  %v393 = vadd.f32 %v248, %v345
  %s394 = scalar_lea.vmem %s0, 72
  %v395 = vld [vmem:[%s394] sm:$0xff]
  %v396 = vld [vmem:[%s394 + $0x8] sm:$0xff]
  %v397 = vld [vmem:[%s394 + $0x10] sm:$0xf]
  %v398 = vld [vmem:[%s394 + $0x18] sm:$0xff]
  %v399 = vld [vmem:[%s394 + $0x20] sm:$0xff]
  %v400 = vld [vmem:[%s394 + $0x28] sm:$0xf]
  %v401 = vld [vmem:[%s394 + $0x30] sm:$0xff]
  %v402 = vld [vmem:[%s394 + $0x38] sm:$0xff]
  %v403 = vld [vmem:[%s394 + $0x40] sm:$0xf]
  %v404 = vld [vmem:[%s394 + $0x48] sm:$0xff]
  %v405 = vld [vmem:[%s394 + $0x50] sm:$0xff]
  %v406 = vld [vmem:[%s394 + $0x58] sm:$0xf]
  %v407 = vld [vmem:[%s394 + $0x60] sm:$0xff]
  %v408 = vld [vmem:[%s394 + $0x68] sm:$0xff]
  %v409 = vld [vmem:[%s394 + $0x70] sm:$0xf]
  %v410 = vld [vmem:[%s394 + $0x78] sm:$0xff]
  %v411 = vld [vmem:[%s394 + $0x80] sm:$0xff]
  %v412 = vld [vmem:[%s394 + $0x88] sm:$0xf]
  %v413 = vld [vmem:[%s394 + $0x90] sm:$0xff]
  %v414 = vld [vmem:[%s394 + $0x98] sm:$0xff]
  %v415 = vld [vmem:[%s394 + $0xa0] sm:$0xf]
  %v416 = vld [vmem:[%s394 + $0xa8] sm:$0xff]
  %v417 = vld [vmem:[%s394 + $0xb0] sm:$0xff]
  %v418 = vld [vmem:[%s394 + $0xb8] sm:$0xf]
  %v419 = vld [vmem:[%s394 + $0xc0] sm:$0xff]
  %v420 = vld [vmem:[%s394 + $0xc8] sm:$0xff]
  %v421 = vld [vmem:[%s394 + $0xd0] sm:$0xf]
  %v422 = vld [vmem:[%s394 + $0xd8] sm:$0xff]
  %v423 = vld [vmem:[%s394 + $0xe0] sm:$0xff]
  %v424 = vld [vmem:[%s394 + $0xe8] sm:$0xf]
  %v425 = vld [vmem:[%s394 + $0xf0] sm:$0xff]
  %v426 = vld [vmem:[%s394 + $0xf8] sm:$0xff]
  %v427 = vld [vmem:[%s394 + $0x100] sm:$0xf]
  %v428 = vld [vmem:[%s394 + $0x108] sm:$0xff]
  %v429 = vld [vmem:[%s394 + $0x110] sm:$0xff]
  %v430 = vld [vmem:[%s394 + $0x118] sm:$0xf]
  %v431 = vld [vmem:[%s394 + $0x120] sm:$0xff]
  %v432 = vld [vmem:[%s394 + $0x128] sm:$0xff]
  %v433 = vld [vmem:[%s394 + $0x130] sm:$0xf]
  %v434 = vld [vmem:[%s394 + $0x138] sm:$0xff]
  %v435 = vld [vmem:[%s394 + $0x140] sm:$0xff]
  %v436 = vld [vmem:[%s394 + $0x148] sm:$0xf]
  %v437 = vld [vmem:[%s394 + $0x150] sm:$0xff]
  %v438 = vld [vmem:[%s394 + $0x158] sm:$0xff]
  %v439 = vld [vmem:[%s394 + $0x160] sm:$0xf]
  %v440 = vld [vmem:[%s394 + $0x168] sm:$0xff]
  %v441 = vld [vmem:[%s394 + $0x170] sm:$0xff]
  %v442 = vld [vmem:[%s394 + $0x178] sm:$0xf]
  %v443 = vmul.f32 %v395, 0.24420136
  %v444 = vmul.f32 %v396, 0.24420136
  %v445 = vmul.f32 %v397, 0.24420136
  %v446 = vmul.f32 %v398, 0.24420136
  %v447 = vmul.f32 %v399, 0.24420136
  %v448 = vmul.f32 %v400, 0.24420136
  %v449 = vmul.f32 %v401, 0.24420136
  %v450 = vmul.f32 %v402, 0.24420136
  %v451 = vmul.f32 %v403, 0.24420136
  %v452 = vmul.f32 %v404, 0.24420136
  %v453 = vmul.f32 %v405, 0.24420136
  %v454 = vmul.f32 %v406, 0.24420136
  %v455 = vmul.f32 %v407, 0.24420136
  %v456 = vmul.f32 %v408, 0.24420136
  %v457 = vmul.f32 %v409, 0.24420136
  %v458 = vmul.f32 %v410, 0.24420136
  %v459 = vmul.f32 %v411, 0.24420136
  %v460 = vmul.f32 %v412, 0.24420136
  %v461 = vmul.f32 %v413, 0.24420136
  %v462 = vmul.f32 %v414, 0.24420136
  %v463 = vmul.f32 %v415, 0.24420136
  %v464 = vmul.f32 %v416, 0.24420136
  %v465 = vmul.f32 %v417, 0.24420136
  %v466 = vmul.f32 %v418, 0.24420136
  %v467 = vmul.f32 %v419, 0.24420136
  %v468 = vmul.f32 %v420, 0.24420136
  %v469 = vmul.f32 %v421, 0.24420136
  %v470 = vmul.f32 %v422, 0.24420136
  %v471 = vmul.f32 %v423, 0.24420136
  %v472 = vmul.f32 %v424, 0.24420136
  %v473 = vmul.f32 %v425, 0.24420136
  %v474 = vmul.f32 %v426, 0.24420136
  %v475 = vmul.f32 %v427, 0.24420136
  %v476 = vmul.f32 %v428, 0.24420136
  %v477 = vmul.f32 %v429, 0.24420136
  %v478 = vmul.f32 %v430, 0.24420136
  %v479 = vmul.f32 %v431, 0.24420136
  %v480 = vmul.f32 %v432, 0.24420136
  %v481 = vmul.f32 %v433, 0.24420136
  %v482 = vmul.f32 %v434, 0.24420136
  %v483 = vmul.f32 %v435, 0.24420136
  %v484 = vmul.f32 %v436, 0.24420136
  %v485 = vmul.f32 %v437, 0.24420136
  %v486 = vmul.f32 %v438, 0.24420136
  %v487 = vmul.f32 %v439, 0.24420136
  %v488 = vmul.f32 %v440, 0.24420136
  %v489 = vmul.f32 %v441, 0.24420136
  %v490 = vmul.f32 %v442, 0.24420136
  %v491 = vadd.f32 %v346, %v443
  %v492 = vadd.f32 %v347, %v444
  %v493 = vadd.f32 %v348, %v445
  %v494 = vadd.f32 %v349, %v446
  %v495 = vadd.f32 %v350, %v447
  %v496 = vadd.f32 %v351, %v448
  %v497 = vadd.f32 %v352, %v449
  %v498 = vadd.f32 %v353, %v450
  %v499 = vadd.f32 %v354, %v451
  %v500 = vadd.f32 %v355, %v452
  %v501 = vadd.f32 %v356, %v453
  %v502 = vadd.f32 %v357, %v454
  %v503 = vadd.f32 %v358, %v455
  %v504 = vadd.f32 %v359, %v456
  %v505 = vadd.f32 %v360, %v457
  %v506 = vadd.f32 %v361, %v458
  %v507 = vadd.f32 %v362, %v459
  %v508 = vadd.f32 %v363, %v460
  %v509 = vadd.f32 %v364, %v461
  %v510 = vadd.f32 %v365, %v462
  %v511 = vadd.f32 %v366, %v463
  %v512 = vadd.f32 %v367, %v464
  %v513 = vadd.f32 %v368, %v465
  %v514 = vadd.f32 %v369, %v466
  %v515 = vadd.f32 %v370, %v467
  %v516 = vadd.f32 %v371, %v468
  %v517 = vadd.f32 %v372, %v469
  %v518 = vadd.f32 %v373, %v470
  %v519 = vadd.f32 %v374, %v471
  %v520 = vadd.f32 %v375, %v472
  %v521 = vadd.f32 %v376, %v473
  %v522 = vadd.f32 %v377, %v474
  %v523 = vadd.f32 %v378, %v475
  %v524 = vadd.f32 %v379, %v476
  %v525 = vadd.f32 %v380, %v477
  %v526 = vadd.f32 %v381, %v478
  %v527 = vadd.f32 %v382, %v479
  %v528 = vadd.f32 %v383, %v480
  %v529 = vadd.f32 %v384, %v481
  %v530 = vadd.f32 %v385, %v482
  %v531 = vadd.f32 %v386, %v483
  %v532 = vadd.f32 %v387, %v484
  %v533 = vadd.f32 %v388, %v485
  %v534 = vadd.f32 %v389, %v486
  %v535 = vadd.f32 %v390, %v487
  %v536 = vadd.f32 %v391, %v488
  %v537 = vadd.f32 %v392, %v489
  %v538 = vadd.f32 %v393, %v490
  %s539 = scalar_lea.vmem %s0, 96
  %v540 = vld [vmem:[%s539] sm:$0xff]
  %v541 = vld [vmem:[%s539 + $0x8] sm:$0xff]
  %v542 = vld [vmem:[%s539 + $0x10] sm:$0xf]
  %v543 = vld [vmem:[%s539 + $0x18] sm:$0xff]
  %v544 = vld [vmem:[%s539 + $0x20] sm:$0xff]
  %v545 = vld [vmem:[%s539 + $0x28] sm:$0xf]
  %v546 = vld [vmem:[%s539 + $0x30] sm:$0xff]
  %v547 = vld [vmem:[%s539 + $0x38] sm:$0xff]
  %v548 = vld [vmem:[%s539 + $0x40] sm:$0xf]
  %v549 = vld [vmem:[%s539 + $0x48] sm:$0xff]
  %v550 = vld [vmem:[%s539 + $0x50] sm:$0xff]
  %v551 = vld [vmem:[%s539 + $0x58] sm:$0xf]
  %v552 = vld [vmem:[%s539 + $0x60] sm:$0xff]
  %v553 = vld [vmem:[%s539 + $0x68] sm:$0xff]
  %v554 = vld [vmem:[%s539 + $0x70] sm:$0xf]
  %v555 = vld [vmem:[%s539 + $0x78] sm:$0xff]
  %v556 = vld [vmem:[%s539 + $0x80] sm:$0xff]
  %v557 = vld [vmem:[%s539 + $0x88] sm:$0xf]
  %v558 = vld [vmem:[%s539 + $0x90] sm:$0xff]
  %v559 = vld [vmem:[%s539 + $0x98] sm:$0xff]
  %v560 = vld [vmem:[%s539 + $0xa0] sm:$0xf]
  %v561 = vld [vmem:[%s539 + $0xa8] sm:$0xff]
  %v562 = vld [vmem:[%s539 + $0xb0] sm:$0xff]
  %v563 = vld [vmem:[%s539 + $0xb8] sm:$0xf]
  %v564 = vld [vmem:[%s539 + $0xc0] sm:$0xff]
  %v565 = vld [vmem:[%s539 + $0xc8] sm:$0xff]
  %v566 = vld [vmem:[%s539 + $0xd0] sm:$0xf]
  %v567 = vld [vmem:[%s539 + $0xd8] sm:$0xff]
  %v568 = vld [vmem:[%s539 + $0xe0] sm:$0xff]
  %v569 = vld [vmem:[%s539 + $0xe8] sm:$0xf]
  %v570 = vld [vmem:[%s539 + $0xf0] sm:$0xff]
  %v571 = vld [vmem:[%s539 + $0xf8] sm:$0xff]
  %v572 = vld [vmem:[%s539 + $0x100] sm:$0xf]
  %v573 = vld [vmem:[%s539 + $0x108] sm:$0xff]
  %v574 = vld [vmem:[%s539 + $0x110] sm:$0xff]
  %v575 = vld [vmem:[%s539 + $0x118] sm:$0xf]
  %v576 = vld [vmem:[%s539 + $0x120] sm:$0xff]
  %v577 = vld [vmem:[%s539 + $0x128] sm:$0xff]
  %v578 = vld [vmem:[%s539 + $0x130] sm:$0xf]
  %v579 = vld [vmem:[%s539 + $0x138] sm:$0xff]
  %v580 = vld [vmem:[%s539 + $0x140] sm:$0xff]
  %v581 = vld [vmem:[%s539 + $0x148] sm:$0xf]
  %v582 = vld [vmem:[%s539 + $0x150] sm:$0xff]
  %v583 = vld [vmem:[%s539 + $0x158] sm:$0xff]
  %v584 = vld [vmem:[%s539 + $0x160] sm:$0xf]
  %v585 = vld [vmem:[%s539 + $0x168] sm:$0xff]
  %v586 = vld [vmem:[%s539 + $0x170] sm:$0xff]
  %v587 = vld [vmem:[%s539 + $0x178] sm:$0xf]
  %v588 = vmul.f32 %v540, 0.05448869
  %v589 = vmul.f32 %v541, 0.05448869
  %v590 = vmul.f32 %v542, 0.05448869
  %v591 = vmul.f32 %v543, 0.05448869
  %v592 = vmul.f32 %v544, 0.05448869
  %v593 = vmul.f32 %v545, 0.05448869
  %v594 = vmul.f32 %v546, 0.05448869
  %v595 = vmul.f32 %v547, 0.05448869
  %v596 = vmul.f32 %v548, 0.05448869
  %v597 = vmul.f32 %v549, 0.05448869
  %v598 = vmul.f32 %v550, 0.05448869
  %v599 = vmul.f32 %v551, 0.05448869
  %v600 = vmul.f32 %v552, 0.05448869
  %v601 = vmul.f32 %v553, 0.05448869
  %v602 = vmul.f32 %v554, 0.05448869
  %v603 = vmul.f32 %v555, 0.05448869
  %v604 = vmul.f32 %v556, 0.05448869
  %v605 = vmul.f32 %v557, 0.05448869
  %v606 = vmul.f32 %v558, 0.05448869
  %v607 = vmul.f32 %v559, 0.05448869
  %v608 = vmul.f32 %v560, 0.05448869
  %v609 = vmul.f32 %v561, 0.05448869
  %v610 = vmul.f32 %v562, 0.05448869
  %v611 = vmul.f32 %v563, 0.05448869
  %v612 = vmul.f32 %v564, 0.05448869
  %v613 = vmul.f32 %v565, 0.05448869
  %v614 = vmul.f32 %v566, 0.05448869
  %v615 = vmul.f32 %v567, 0.05448869
  %v616 = vmul.f32 %v568, 0.05448869
  %v617 = vmul.f32 %v569, 0.05448869
  %v618 = vmul.f32 %v570, 0.05448869
  %v619 = vmul.f32 %v571, 0.05448869
  %v620 = vmul.f32 %v572, 0.05448869
  %v621 = vmul.f32 %v573, 0.05448869
  %v622 = vmul.f32 %v574, 0.05448869
  %v623 = vmul.f32 %v575, 0.05448869
  %v624 = vmul.f32 %v576, 0.05448869
  %v625 = vmul.f32 %v577, 0.05448869
  %v626 = vmul.f32 %v578, 0.05448869
  %v627 = vmul.f32 %v579, 0.05448869
  %v628 = vmul.f32 %v580, 0.05448869
  %v629 = vmul.f32 %v581, 0.05448869
  %v630 = vmul.f32 %v582, 0.05448869
  %v631 = vmul.f32 %v583, 0.05448869
  %v632 = vmul.f32 %v584, 0.05448869
  %v633 = vmul.f32 %v585, 0.05448869
  %v634 = vmul.f32 %v586, 0.05448869
  %v635 = vmul.f32 %v587, 0.05448869
  %v636 = vadd.f32 %v491, %v588
  %v637 = vadd.f32 %v492, %v589
  %v638 = vadd.f32 %v493, %v590
  %v639 = vadd.f32 %v494, %v591
  %v640 = vadd.f32 %v495, %v592
  %v641 = vadd.f32 %v496, %v593
  %v642 = vadd.f32 %v497, %v594
  %v643 = vadd.f32 %v498, %v595
  %v644 = vadd.f32 %v499, %v596
  %v645 = vadd.f32 %v500, %v597
  %v646 = vadd.f32 %v501, %v598
  %v647 = vadd.f32 %v502, %v599
  %v648 = vadd.f32 %v503, %v600
  %v649 = vadd.f32 %v504, %v601
  %v650 = vadd.f32 %v505, %v602
  %v651 = vadd.f32 %v506, %v603
  %v652 = vadd.f32 %v507, %v604
  %v653 = vadd.f32 %v508, %v605
  %v654 = vadd.f32 %v509, %v606
  %v655 = vadd.f32 %v510, %v607
  %v656 = vadd.f32 %v511, %v608
  %v657 = vadd.f32 %v512, %v609
  %v658 = vadd.f32 %v513, %v610
  %v659 = vadd.f32 %v514, %v611
  %v660 = vadd.f32 %v515, %v612
  %v661 = vadd.f32 %v516, %v613
  %v662 = vadd.f32 %v517, %v614
  %v663 = vadd.f32 %v518, %v615
  %v664 = vadd.f32 %v519, %v616
  %v665 = vadd.f32 %v520, %v617
  %v666 = vadd.f32 %v521, %v618
  %v667 = vadd.f32 %v522, %v619
  %v668 = vadd.f32 %v523, %v620
  %v669 = vadd.f32 %v524, %v621
  %v670 = vadd.f32 %v525, %v622
  %v671 = vadd.f32 %v526, %v623
  %v672 = vadd.f32 %v527, %v624
  %v673 = vadd.f32 %v528, %v625
  %v674 = vadd.f32 %v529, %v626
  %v675 = vadd.f32 %v530, %v627
  %v676 = vadd.f32 %v531, %v628
  %v677 = vadd.f32 %v532, %v629
  %v678 = vadd.f32 %v533, %v630
  %v679 = vadd.f32 %v534, %v631
  %v680 = vadd.f32 %v535, %v632
  %v681 = vadd.f32 %v536, %v633
  %v682 = vadd.f32 %v537, %v634
  %v683 = vadd.f32 %v538, %v635
  %vm684 = vcmask 64512
  %685 = vst.msk [vmem:[#allocation2] sm:$0xff] %vm684, %v636
  %686 = vst.msk [vmem:[#allocation2 + $0x8] sm:$0xff] %vm684, %v637
  %vm687 = vcmask 60416
  %688 = vst.msk [vmem:[#allocation2 + $0x10] sm:$0xf] %vm687, %v638
  %689 = vst.msk [vmem:[#allocation2 + $0x18] sm:$0xff] %vm684, %v639
  %690 = vst.msk [vmem:[#allocation2 + $0x20] sm:$0xff] %vm684, %v640
  %691 = vst.msk [vmem:[#allocation2 + $0x28] sm:$0xf] %vm687, %v641
  %692 = vst.msk [vmem:[#allocation2 + $0x30] sm:$0xff] %vm684, %v642
  %693 = vst.msk [vmem:[#allocation2 + $0x38] sm:$0xff] %vm684, %v643
  %694 = vst.msk [vmem:[#allocation2 + $0x40] sm:$0xf] %vm687, %v644
  %695 = vst.msk [vmem:[#allocation2 + $0x48] sm:$0xff] %vm684, %v645
  %696 = vst.msk [vmem:[#allocation2 + $0x50] sm:$0xff] %vm684, %v646
  %697 = vst.msk [vmem:[#allocation2 + $0x58] sm:$0xf] %vm687, %v647
  %698 = vst.msk [vmem:[#allocation2 + $0x60] sm:$0xff] %vm684, %v648
  %699 = vst.msk [vmem:[#allocation2 + $0x68] sm:$0xff] %vm684, %v649
  %700 = vst.msk [vmem:[#allocation2 + $0x70] sm:$0xf] %vm687, %v650
  %701 = vst.msk [vmem:[#allocation2 + $0x78] sm:$0xff] %vm684, %v651
  %702 = vst.msk [vmem:[#allocation2 + $0x80] sm:$0xff] %vm684, %v652
  %703 = vst.msk [vmem:[#allocation2 + $0x88] sm:$0xf] %vm687, %v653
  %704 = vst.msk [vmem:[#allocation2 + $0x90] sm:$0xff] %vm684, %v654
  %705 = vst.msk [vmem:[#allocation2 + $0x98] sm:$0xff] %vm684, %v655
  %706 = vst.msk [vmem:[#allocation2 + $0xa0] sm:$0xf] %vm687, %v656
  %707 = vst.msk [vmem:[#allocation2 + $0xa8] sm:$0xff] %vm684, %v657
  %708 = vst.msk [vmem:[#allocation2 + $0xb0] sm:$0xff] %vm684, %v658
  %709 = vst.msk [vmem:[#allocation2 + $0xb8] sm:$0xf] %vm687, %v659
  %710 = vst.msk [vmem:[#allocation2 + $0xc0] sm:$0xff] %vm684, %v660
  %711 = vst.msk [vmem:[#allocation2 + $0xc8] sm:$0xff] %vm684, %v661
  %712 = vst.msk [vmem:[#allocation2 + $0xd0] sm:$0xf] %vm687, %v662
  %713 = vst.msk [vmem:[#allocation2 + $0xd8] sm:$0xff] %vm684, %v663
  %714 = vst.msk [vmem:[#allocation2 + $0xe0] sm:$0xff] %vm684, %v664
  %715 = vst.msk [vmem:[#allocation2 + $0xe8] sm:$0xf] %vm687, %v665
  %716 = vst.msk [vmem:[#allocation2 + $0xf0] sm:$0xff] %vm684, %v666
  %717 = vst.msk [vmem:[#allocation2 + $0xf8] sm:$0xff] %vm684, %v667
  %718 = vst.msk [vmem:[#allocation2 + $0x100] sm:$0xf] %vm687, %v668
  %719 = vst.msk [vmem:[#allocation2 + $0x108] sm:$0xff] %vm684, %v669
  %720 = vst.msk [vmem:[#allocation2 + $0x110] sm:$0xff] %vm684, %v670
  %721 = vst.msk [vmem:[#allocation2 + $0x118] sm:$0xf] %vm687, %v671
  %722 = vst.msk [vmem:[#allocation2 + $0x120] sm:$0xff] %vm684, %v672
  %723 = vst.msk [vmem:[#allocation2 + $0x128] sm:$0xff] %vm684, %v673
  %724 = vst.msk [vmem:[#allocation2 + $0x130] sm:$0xf] %vm687, %v674
  %725 = vst.msk [vmem:[#allocation2 + $0x138] sm:$0xff] %vm684, %v675
  %726 = vst.msk [vmem:[#allocation2 + $0x140] sm:$0xff] %vm684, %v676
  %727 = vst.msk [vmem:[#allocation2 + $0x148] sm:$0xf] %vm687, %v677
  %728 = vst.msk [vmem:[#allocation2 + $0x150] sm:$0xff] %vm684, %v678
  %729 = vst.msk [vmem:[#allocation2 + $0x158] sm:$0xff] %vm684, %v679
  %730 = vst.msk [vmem:[#allocation2 + $0x160] sm:$0xf] %vm687, %v680
  %731 = vst.msk [vmem:[#allocation2 + $0x168] sm:$0xff] %vm684, %v681
  %732 = vst.msk [vmem:[#allocation2 + $0x170] sm:$0xff] %vm684, %v682
  %733 = vst.msk [vmem:[#allocation2 + $0x178] sm:$0xf] %vm687, %v683
  %v734 = vld [vmem:[#allocation2] sm:$0xff]
  %v735 = vld [vmem:[#allocation2 + $0x8] sm:$0xff]
  %v736 = vld [vmem:[#allocation2 + $0x18] sm:$0xff]
  %v737 = vld [vmem:[#allocation2 + $0x20] sm:$0xff]
  %v738 = vld [vmem:[#allocation2 + $0x30] sm:$0xff]
  %v739 = vld [vmem:[#allocation2 + $0x38] sm:$0xff]
  %v740 = vld [vmem:[#allocation2 + $0x48] sm:$0xff]
  %v741 = vld [vmem:[#allocation2 + $0x50] sm:$0xff]
  %v742 = vld [vmem:[#allocation2 + $0x60] sm:$0xff]
  %v743 = vld [vmem:[#allocation2 + $0x68] sm:$0xff]
  %v744 = vld [vmem:[#allocation2 + $0x78] sm:$0xff]
  %v745 = vld [vmem:[#allocation2 + $0x80] sm:$0xff]
  %v746 = vld [vmem:[#allocation2 + $0x90] sm:$0xff]
  %v747 = vld [vmem:[#allocation2 + $0x98] sm:$0xff]
  %v748 = vld [vmem:[#allocation2 + $0xa8] sm:$0xff]
  %v749 = vld [vmem:[#allocation2 + $0xb0] sm:$0xff]
  %v750 = vld [vmem:[#allocation2 + $0xc0] sm:$0xff]
  %v751 = vld [vmem:[#allocation2 + $0xc8] sm:$0xff]
  %v752 = vld [vmem:[#allocation2 + $0xd8] sm:$0xff]
  %v753 = vld [vmem:[#allocation2 + $0xe0] sm:$0xff]
  %v754 = vld [vmem:[#allocation2 + $0xf0] sm:$0xff]
  %v755 = vld [vmem:[#allocation2 + $0xf8] sm:$0xff]
  %v756 = vld [vmem:[#allocation2 + $0x108] sm:$0xff]
  %v757 = vld [vmem:[#allocation2 + $0x110] sm:$0xff]
  %v758 = vld [vmem:[#allocation2 + $0x120] sm:$0xff]
  %v759 = vld [vmem:[#allocation2 + $0x128] sm:$0xff]
  %v760 = vld [vmem:[#allocation2 + $0x138] sm:$0xff]
  %v761 = vld [vmem:[#allocation2 + $0x140] sm:$0xff]
  %v762 = vld [vmem:[#allocation2 + $0x150] sm:$0xff]
  %v763 = vld [vmem:[#allocation2 + $0x158] sm:$0xff]
  %v764 = vld [vmem:[#allocation2 + $0x168] sm:$0xff]
  %v765 = vld [vmem:[#allocation2 + $0x170] sm:$0xff]
  %v766 = vmul.f32 %v734, 0.05448869
  %v767 = vmul.f32 %v735, 0.05448869
  %v768 = vmul.f32 %v736, 0.05448869
  %v769 = vmul.f32 %v737, 0.05448869
  %v770 = vmul.f32 %v738, 0.05448869
  %v771 = vmul.f32 %v739, 0.05448869
  %v772 = vmul.f32 %v740, 0.05448869
  %v773 = vmul.f32 %v741, 0.05448869
  %v774 = vmul.f32 %v742, 0.05448869
  %v775 = vmul.f32 %v743, 0.05448869
  %v776 = vmul.f32 %v744, 0.05448869
  %v777 = vmul.f32 %v745, 0.05448869
  %v778 = vmul.f32 %v746, 0.05448869
  %v779 = vmul.f32 %v747, 0.05448869
  %v780 = vmul.f32 %v748, 0.05448869
  %v781 = vmul.f32 %v749, 0.05448869
  %v782 = vmul.f32 %v750, 0.05448869
  %v783 = vmul.f32 %v751, 0.05448869
  %v784 = vmul.f32 %v752, 0.05448869
  %v785 = vmul.f32 %v753, 0.05448869
  %v786 = vmul.f32 %v754, 0.05448869
  %v787 = vmul.f32 %v755, 0.05448869
  %v788 = vmul.f32 %v756, 0.05448869
  %v789 = vmul.f32 %v757, 0.05448869
  %v790 = vmul.f32 %v758, 0.05448869
  %v791 = vmul.f32 %v759, 0.05448869
  %v792 = vmul.f32 %v760, 0.05448869
  %v793 = vmul.f32 %v761, 0.05448869
  %v794 = vmul.f32 %v762, 0.05448869
  %v795 = vmul.f32 %v763, 0.05448869
  %v796 = vmul.f32 %v764, 0.05448869
  %v797 = vmul.f32 %v765, 0.05448869
  %v798 = vld [vmem:[#allocation2 + $0x1] sm:$0xff]
  %v799 = vld [vmem:[#allocation2 + $0x9] sm:$0xff]
  %v800 = vld [vmem:[#allocation2 + $0x19] sm:$0xff]
  %v801 = vld [vmem:[#allocation2 + $0x21] sm:$0xff]
  %v802 = vld [vmem:[#allocation2 + $0x31] sm:$0xff]
  %v803 = vld [vmem:[#allocation2 + $0x39] sm:$0xff]
  %v804 = vld [vmem:[#allocation2 + $0x49] sm:$0xff]
  %v805 = vld [vmem:[#allocation2 + $0x51] sm:$0xff]
  %v806 = vld [vmem:[#allocation2 + $0x61] sm:$0xff]
  %v807 = vld [vmem:[#allocation2 + $0x69] sm:$0xff]
  %v808 = vld [vmem:[#allocation2 + $0x79] sm:$0xff]
  %v809 = vld [vmem:[#allocation2 + $0x81] sm:$0xff]
  %v810 = vld [vmem:[#allocation2 + $0x91] sm:$0xff]
  %v811 = vld [vmem:[#allocation2 + $0x99] sm:$0xff]
  %v812 = vld [vmem:[#allocation2 + $0xa9] sm:$0xff]
  %v813 = vld [vmem:[#allocation2 + $0xb1] sm:$0xff]
  %v814 = vld [vmem:[#allocation2 + $0xc1] sm:$0xff]
  %v815 = vld [vmem:[#allocation2 + $0xc9] sm:$0xff]
  %v816 = vld [vmem:[#allocation2 + $0xd9] sm:$0xff]
  %v817 = vld [vmem:[#allocation2 + $0xe1] sm:$0xff]
  %v818 = vld [vmem:[#allocation2 + $0xf1] sm:$0xff]
  %v819 = vld [vmem:[#allocation2 + $0xf9] sm:$0xff]
  %v820 = vld [vmem:[#allocation2 + $0x109] sm:$0xff]
  %v821 = vld [vmem:[#allocation2 + $0x111] sm:$0xff]
  %v822 = vld [vmem:[#allocation2 + $0x121] sm:$0xff]
  %v823 = vld [vmem:[#allocation2 + $0x129] sm:$0xff]
  %v824 = vld [vmem:[#allocation2 + $0x139] sm:$0xff]
  %v825 = vld [vmem:[#allocation2 + $0x141] sm:$0xff]
  %v826 = vld [vmem:[#allocation2 + $0x151] sm:$0xff]
  %v827 = vld [vmem:[#allocation2 + $0x159] sm:$0xff]
  %v828 = vld [vmem:[#allocation2 + $0x169] sm:$0xff]
  %v829 = vld [vmem:[#allocation2 + $0x171] sm:$0xff]
  %v830 = vmul.f32 %v798, 0.24420136
  %v831 = vmul.f32 %v799, 0.24420136
  %v832 = vmul.f32 %v800, 0.24420136
  %v833 = vmul.f32 %v801, 0.24420136
  %v834 = vmul.f32 %v802, 0.24420136
  %v835 = vmul.f32 %v803, 0.24420136
  %v836 = vmul.f32 %v804, 0.24420136
  %v837 = vmul.f32 %v805, 0.24420136
  %v838 = vmul.f32 %v806, 0.24420136
  %v839 = vmul.f32 %v807, 0.24420136
  %v840 = vmul.f32 %v808, 0.24420136
  %v841 = vmul.f32 %v809, 0.24420136
  %v842 = vmul.f32 %v810, 0.24420136
  %v843 = vmul.f32 %v811, 0.24420136
  %v844 = vmul.f32 %v812, 0.24420136
  %v845 = vmul.f32 %v813, 0.24420136
  %v846 = vmul.f32 %v814, 0.24420136
  %v847 = vmul.f32 %v815, 0.24420136
  %v848 = vmul.f32 %v816, 0.24420136
  %v849 = vmul.f32 %v817, 0.24420136
  %v850 = vmul.f32 %v818, 0.24420136
  %v851 = vmul.f32 %v819, 0.24420136
  %v852 = vmul.f32 %v820, 0.24420136
  %v853 = vmul.f32 %v821, 0.24420136
  %v854 = vmul.f32 %v822, 0.24420136
  %v855 = vmul.f32 %v823, 0.24420136
  %v856 = vmul.f32 %v824, 0.24420136
  %v857 = vmul.f32 %v825, 0.24420136
  %v858 = vmul.f32 %v826, 0.24420136
  %v859 = vmul.f32 %v827, 0.24420136
  %v860 = vmul.f32 %v828, 0.24420136
  %v861 = vmul.f32 %v829, 0.24420136
  %v862 = vadd.f32 %v766, %v830
  %v863 = vadd.f32 %v767, %v831
  %v864 = vadd.f32 %v768, %v832
  %v865 = vadd.f32 %v769, %v833
  %v866 = vadd.f32 %v770, %v834
  %v867 = vadd.f32 %v771, %v835
  %v868 = vadd.f32 %v772, %v836
  %v869 = vadd.f32 %v773, %v837
  %v870 = vadd.f32 %v774, %v838
  %v871 = vadd.f32 %v775, %v839
  %v872 = vadd.f32 %v776, %v840
  %v873 = vadd.f32 %v777, %v841
  %v874 = vadd.f32 %v778, %v842
  %v875 = vadd.f32 %v779, %v843
  %v876 = vadd.f32 %v780, %v844
  %v877 = vadd.f32 %v781, %v845
  %v878 = vadd.f32 %v782, %v846
  %v879 = vadd.f32 %v783, %v847
  %v880 = vadd.f32 %v784, %v848
  %v881 = vadd.f32 %v785, %v849
  %v882 = vadd.f32 %v786, %v850
  %v883 = vadd.f32 %v787, %v851
  %v884 = vadd.f32 %v788, %v852
  %v885 = vadd.f32 %v789, %v853
  %v886 = vadd.f32 %v790, %v854
  %v887 = vadd.f32 %v791, %v855
  %v888 = vadd.f32 %v792, %v856
  %v889 = vadd.f32 %v793, %v857
  %v890 = vadd.f32 %v794, %v858
  %v891 = vadd.f32 %v795, %v859
  %v892 = vadd.f32 %v796, %v860
  %v893 = vadd.f32 %v797, %v861
  %v894 = vld [vmem:[#allocation2 + $0x2] sm:$0xff]
  %v895 = vld [vmem:[#allocation2 + $0xa] sm:$0xff]
  %v896 = vld [vmem:[#allocation2 + $0x1a] sm:$0xff]
  %v897 = vld [vmem:[#allocation2 + $0x22] sm:$0xff]
  %v898 = vld [vmem:[#allocation2 + $0x32] sm:$0xff]
  %v899 = vld [vmem:[#allocation2 + $0x3a] sm:$0xff]
  %v900 = vld [vmem:[#allocation2 + $0x4a] sm:$0xff]
  %v901 = vld [vmem:[#allocation2 + $0x52] sm:$0xff]
  %v902 = vld [vmem:[#allocation2 + $0x62] sm:$0xff]
  %v903 = vld [vmem:[#allocation2 + $0x6a] sm:$0xff]
  %v904 = vld [vmem:[#allocation2 + $0x7a] sm:$0xff]
  %v905 = vld [vmem:[#allocation2 + $0x82] sm:$0xff]
  %v906 = vld [vmem:[#allocation2 + $0x92] sm:$0xff]
  %v907 = vld [vmem:[#allocation2 + $0x9a] sm:$0xff]
  %v908 = vld [vmem:[#allocation2 + $0xaa] sm:$0xff]
  %v909 = vld [vmem:[#allocation2 + $0xb2] sm:$0xff]
  %v910 = vld [vmem:[#allocation2 + $0xc2] sm:$0xff]
  %v911 = vld [vmem:[#allocation2 + $0xca] sm:$0xff]
  %v912 = vld [vmem:[#allocation2 + $0xda] sm:$0xff]
  %v913 = vld [vmem:[#allocation2 + $0xe2] sm:$0xff]
  %v914 = vld [vmem:[#allocation2 + $0xf2] sm:$0xff]
  %v915 = vld [vmem:[#allocation2 + $0xfa] sm:$0xff]
  %v916 = vld [vmem:[#allocation2 + $0x10a] sm:$0xff]
  %v917 = vld [vmem:[#allocation2 + $0x112] sm:$0xff]
  %v918 = vld [vmem:[#allocation2 + $0x122] sm:$0xff]
  %v919 = vld [vmem:[#allocation2 + $0x12a] sm:$0xff]
  %v920 = vld [vmem:[#allocation2 + $0x13a] sm:$0xff]
  %v921 = vld [vmem:[#allocation2 + $0x142] sm:$0xff]
  %v922 = vld [vmem:[#allocation2 + $0x152] sm:$0xff]
  %v923 = vld [vmem:[#allocation2 + $0x15a] sm:$0xff]
  %v924 = vld [vmem:[#allocation2 + $0x16a] sm:$0xff]
  %v925 = vld [vmem:[#allocation2 + $0x172] sm:$0xff]
  %v926 = vmul.f32 %v894, 0.40261996
  %v927 = vmul.f32 %v895, 0.40261996
  %v928 = vmul.f32 %v896, 0.40261996
  %v929 = vmul.f32 %v897, 0.40261996
  %v930 = vmul.f32 %v898, 0.40261996
  %v931 = vmul.f32 %v899, 0.40261996
  %v932 = vmul.f32 %v900, 0.40261996
  %v933 = vmul.f32 %v901, 0.40261996
  %v934 = vmul.f32 %v902, 0.40261996
  %v935 = vmul.f32 %v903, 0.40261996
  %v936 = vmul.f32 %v904, 0.40261996
  %v937 = vmul.f32 %v905, 0.40261996
  %v938 = vmul.f32 %v906, 0.40261996
  %v939 = vmul.f32 %v907, 0.40261996
  %v940 = vmul.f32 %v908, 0.40261996
  %v941 = vmul.f32 %v909, 0.40261996
  %v942 = vmul.f32 %v910, 0.40261996
  %v943 = vmul.f32 %v911, 0.40261996
  %v944 = vmul.f32 %v912, 0.40261996
  %v945 = vmul.f32 %v913, 0.40261996
  %v946 = vmul.f32 %v914, 0.40261996
  %v947 = vmul.f32 %v915, 0.40261996
  %v948 = vmul.f32 %v916, 0.40261996
  %v949 = vmul.f32 %v917, 0.40261996
  %v950 = vmul.f32 %v918, 0.40261996
  %v951 = vmul.f32 %v919, 0.40261996
  %v952 = vmul.f32 %v920, 0.40261996
  %v953 = vmul.f32 %v921, 0.40261996
  %v954 = vmul.f32 %v922, 0.40261996
  %v955 = vmul.f32 %v923, 0.40261996
  %v956 = vmul.f32 %v924, 0.40261996
  %v957 = vmul.f32 %v925, 0.40261996
  %v958 = vadd.f32 %v862, %v926
  %v959 = vadd.f32 %v863, %v927
  %v960 = vadd.f32 %v864, %v928
  %v961 = vadd.f32 %v865, %v929
  %v962 = vadd.f32 %v866, %v930
  %v963 = vadd.f32 %v867, %v931
  %v964 = vadd.f32 %v868, %v932
  %v965 = vadd.f32 %v869, %v933
  %v966 = vadd.f32 %v870, %v934
  %v967 = vadd.f32 %v871, %v935
  %v968 = vadd.f32 %v872, %v936
  %v969 = vadd.f32 %v873, %v937
  %v970 = vadd.f32 %v874, %v938
  %v971 = vadd.f32 %v875, %v939
  %v972 = vadd.f32 %v876, %v940
  %v973 = vadd.f32 %v877, %v941
  %v974 = vadd.f32 %v878, %v942
  %v975 = vadd.f32 %v879, %v943
  %v976 = vadd.f32 %v880, %v944
  %v977 = vadd.f32 %v881, %v945
  %v978 = vadd.f32 %v882, %v946
  %v979 = vadd.f32 %v883, %v947
  %v980 = vadd.f32 %v884, %v948
  %v981 = vadd.f32 %v885, %v949
  %v982 = vadd.f32 %v886, %v950
  %v983 = vadd.f32 %v887, %v951
  %v984 = vadd.f32 %v888, %v952
  %v985 = vadd.f32 %v889, %v953
  %v986 = vadd.f32 %v890, %v954
  %v987 = vadd.f32 %v891, %v955
  %v988 = vadd.f32 %v892, %v956
  %v989 = vadd.f32 %v893, %v957
  %v990 = vld [vmem:[#allocation2 + $0x3] sm:$0xff]
  %v991 = vld [vmem:[#allocation2 + $0xb] sm:$0xff]
  %v992 = vld [vmem:[#allocation2 + $0x1b] sm:$0xff]
  %v993 = vld [vmem:[#allocation2 + $0x23] sm:$0xff]
  %v994 = vld [vmem:[#allocation2 + $0x33] sm:$0xff]
  %v995 = vld [vmem:[#allocation2 + $0x3b] sm:$0xff]
  %v996 = vld [vmem:[#allocation2 + $0x4b] sm:$0xff]
  %v997 = vld [vmem:[#allocation2 + $0x53] sm:$0xff]
  %v998 = vld [vmem:[#allocation2 + $0x63] sm:$0xff]
  %v999 = vld [vmem:[#allocation2 + $0x6b] sm:$0xff]
  %v1000 = vld [vmem:[#allocation2 + $0x7b] sm:$0xff]
  %v1001 = vld [vmem:[#allocation2 + $0x83] sm:$0xff]
  %v1002 = vld [vmem:[#allocation2 + $0x93] sm:$0xff]
  %v1003 = vld [vmem:[#allocation2 + $0x9b] sm:$0xff]
  %v1004 = vld [vmem:[#allocation2 + $0xab] sm:$0xff]
  %v1005 = vld [vmem:[#allocation2 + $0xb3] sm:$0xff]
  %v1006 = vld [vmem:[#allocation2 + $0xc3] sm:$0xff]
  %v1007 = vld [vmem:[#allocation2 + $0xcb] sm:$0xff]
  %v1008 = vld [vmem:[#allocation2 + $0xdb] sm:$0xff]
  %v1009 = vld [vmem:[#allocation2 + $0xe3] sm:$0xff]
  %v1010 = vld [vmem:[#allocation2 + $0xf3] sm:$0xff]
  %v1011 = vld [vmem:[#allocation2 + $0xfb] sm:$0xff]
  %v1012 = vld [vmem:[#allocation2 + $0x10b] sm:$0xff]
  %v1013 = vld [vmem:[#allocation2 + $0x113] sm:$0xff]
  %v1014 = vld [vmem:[#allocation2 + $0x123] sm:$0xff]
  %v1015 = vld [vmem:[#allocation2 + $0x12b] sm:$0xff]
  %v1016 = vld [vmem:[#allocation2 + $0x13b] sm:$0xff]
  %v1017 = vld [vmem:[#allocation2 + $0x143] sm:$0xff]
  %v1018 = vld [vmem:[#allocation2 + $0x153] sm:$0xff]
  %v1019 = vld [vmem:[#allocation2 + $0x15b] sm:$0xff]
  %v1020 = vld [vmem:[#allocation2 + $0x16b] sm:$0xff]
  %v1021 = vld [vmem:[#allocation2 + $0x173] sm:$0xff]
  %v1022 = vmul.f32 %v990, 0.24420136
  %v1023 = vmul.f32 %v991, 0.24420136
  %v1024 = vmul.f32 %v992, 0.24420136
  %v1025 = vmul.f32 %v993, 0.24420136
  %v1026 = vmul.f32 %v994, 0.24420136
  %v1027 = vmul.f32 %v995, 0.24420136
  %v1028 = vmul.f32 %v996, 0.24420136
  %v1029 = vmul.f32 %v997, 0.24420136
  %v1030 = vmul.f32 %v998, 0.24420136
  %v1031 = vmul.f32 %v999, 0.24420136
  %v1032 = vmul.f32 %v1000, 0.24420136
  %v1033 = vmul.f32 %v1001, 0.24420136
  %v1034 = vmul.f32 %v1002, 0.24420136
  %v1035 = vmul.f32 %v1003, 0.24420136
  %v1036 = vmul.f32 %v1004, 0.24420136
  %v1037 = vmul.f32 %v1005, 0.24420136
  %v1038 = vmul.f32 %v1006, 0.24420136
  %v1039 = vmul.f32 %v1007, 0.24420136
  %v1040 = vmul.f32 %v1008, 0.24420136
  %v1041 = vmul.f32 %v1009, 0.24420136
  %v1042 = vmul.f32 %v1010, 0.24420136
  %v1043 = vmul.f32 %v1011, 0.24420136
  %v1044 = vmul.f32 %v1012, 0.24420136
  %v1045 = vmul.f32 %v1013, 0.24420136
  %v1046 = vmul.f32 %v1014, 0.24420136
  %v1047 = vmul.f32 %v1015, 0.24420136
  %v1048 = vmul.f32 %v1016, 0.24420136
  %v1049 = vmul.f32 %v1017, 0.24420136
  %v1050 = vmul.f32 %v1018, 0.24420136
  %v1051 = vmul.f32 %v1019, 0.24420136
  %v1052 = vmul.f32 %v1020, 0.24420136
  %v1053 = vmul.f32 %v1021, 0.24420136
  %v1054 = vadd.f32 %v958, %v1022
  %v1055 = vadd.f32 %v959, %v1023
  %v1056 = vadd.f32 %v960, %v1024
  %v1057 = vadd.f32 %v961, %v1025
  %v1058 = vadd.f32 %v962, %v1026
  %v1059 = vadd.f32 %v963, %v1027
  %v1060 = vadd.f32 %v964, %v1028
  %v1061 = vadd.f32 %v965, %v1029
  %v1062 = vadd.f32 %v966, %v1030
  %v1063 = vadd.f32 %v967, %v1031
  %v1064 = vadd.f32 %v968, %v1032
  %v1065 = vadd.f32 %v969, %v1033
  %v1066 = vadd.f32 %v970, %v1034
  %v1067 = vadd.f32 %v971, %v1035
  %v1068 = vadd.f32 %v972, %v1036
  %v1069 = vadd.f32 %v973, %v1037
  %v1070 = vadd.f32 %v974, %v1038
  %v1071 = vadd.f32 %v975, %v1039
  %v1072 = vadd.f32 %v976, %v1040
  %v1073 = vadd.f32 %v977, %v1041
  %v1074 = vadd.f32 %v978, %v1042
  %v1075 = vadd.f32 %v979, %v1043
  %v1076 = vadd.f32 %v980, %v1044
  %v1077 = vadd.f32 %v981, %v1045
  %v1078 = vadd.f32 %v982, %v1046
  %v1079 = vadd.f32 %v983, %v1047
  %v1080 = vadd.f32 %v984, %v1048
  %v1081 = vadd.f32 %v985, %v1049
  %v1082 = vadd.f32 %v986, %v1050
  %v1083 = vadd.f32 %v987, %v1051
  %v1084 = vadd.f32 %v988, %v1052
  %v1085 = vadd.f32 %v989, %v1053
  %v1086 = vld [vmem:[#allocation2 + $0x4] sm:$0xff]
  %v1087 = vld [vmem:[#allocation2 + $0xc] sm:$0xff]
  %v1088 = vld [vmem:[#allocation2 + $0x1c] sm:$0xff]
  %v1089 = vld [vmem:[#allocation2 + $0x24] sm:$0xff]
  %v1090 = vld [vmem:[#allocation2 + $0x34] sm:$0xff]
  %v1091 = vld [vmem:[#allocation2 + $0x3c] sm:$0xff]
  %v1092 = vld [vmem:[#allocation2 + $0x4c] sm:$0xff]
  %v1093 = vld [vmem:[#allocation2 + $0x54] sm:$0xff]
  %v1094 = vld [vmem:[#allocation2 + $0x64] sm:$0xff]
  %v1095 = vld [vmem:[#allocation2 + $0x6c] sm:$0xff]
  %v1096 = vld [vmem:[#allocation2 + $0x7c] sm:$0xff]
  %v1097 = vld [vmem:[#allocation2 + $0x84] sm:$0xff]
  %v1098 = vld [vmem:[#allocation2 + $0x94] sm:$0xff]
  %v1099 = vld [vmem:[#allocation2 + $0x9c] sm:$0xff]
  %v1100 = vld [vmem:[#allocation2 + $0xac] sm:$0xff]
  %v1101 = vld [vmem:[#allocation2 + $0xb4] sm:$0xff]
  %v1102 = vld [vmem:[#allocation2 + $0xc4] sm:$0xff]
  %v1103 = vld [vmem:[#allocation2 + $0xcc] sm:$0xff]
  %v1104 = vld [vmem:[#allocation2 + $0xdc] sm:$0xff]
  %v1105 = vld [vmem:[#allocation2 + $0xe4] sm:$0xff]
  %v1106 = vld [vmem:[#allocation2 + $0xf4] sm:$0xff]
  %v1107 = vld [vmem:[#allocation2 + $0xfc] sm:$0xff]
  %v1108 = vld [vmem:[#allocation2 + $0x10c] sm:$0xff]
  %v1109 = vld [vmem:[#allocation2 + $0x114] sm:$0xff]
  %v1110 = vld [vmem:[#allocation2 + $0x124] sm:$0xff]
  %v1111 = vld [vmem:[#allocation2 + $0x12c] sm:$0xff]
  %v1112 = vld [vmem:[#allocation2 + $0x13c] sm:$0xff]
  %v1113 = vld [vmem:[#allocation2 + $0x144] sm:$0xff]
  %v1114 = vld [vmem:[#allocation2 + $0x154] sm:$0xff]
  %v1115 = vld [vmem:[#allocation2 + $0x15c] sm:$0xff]
  %v1116 = vld [vmem:[#allocation2 + $0x16c] sm:$0xff]
  %v1117 = vld [vmem:[#allocation2 + $0x174] sm:$0xff]
  %v1118 = vmul.f32 %v1086, 0.05448869
  %v1119 = vmul.f32 %v1087, 0.05448869
  %v1120 = vmul.f32 %v1088, 0.05448869
  %v1121 = vmul.f32 %v1089, 0.05448869
  %v1122 = vmul.f32 %v1090, 0.05448869
  %v1123 = vmul.f32 %v1091, 0.05448869
  %v1124 = vmul.f32 %v1092, 0.05448869
  %v1125 = vmul.f32 %v1093, 0.05448869
  %v1126 = vmul.f32 %v1094, 0.05448869
  %v1127 = vmul.f32 %v1095, 0.05448869
  %v1128 = vmul.f32 %v1096, 0.05448869
  %v1129 = vmul.f32 %v1097, 0.05448869
  %v1130 = vmul.f32 %v1098, 0.05448869
  %v1131 = vmul.f32 %v1099, 0.05448869
  %v1132 = vmul.f32 %v1100, 0.05448869
  %v1133 = vmul.f32 %v1101, 0.05448869
  %v1134 = vmul.f32 %v1102, 0.05448869
  %v1135 = vmul.f32 %v1103, 0.05448869
  %v1136 = vmul.f32 %v1104, 0.05448869
  %v1137 = vmul.f32 %v1105, 0.05448869
  %v1138 = vmul.f32 %v1106, 0.05448869
  %v1139 = vmul.f32 %v1107, 0.05448869
  %v1140 = vmul.f32 %v1108, 0.05448869
  %v1141 = vmul.f32 %v1109, 0.05448869
  %v1142 = vmul.f32 %v1110, 0.05448869
  %v1143 = vmul.f32 %v1111, 0.05448869
  %v1144 = vmul.f32 %v1112, 0.05448869
  %v1145 = vmul.f32 %v1113, 0.05448869
  %v1146 = vmul.f32 %v1114, 0.05448869
  %v1147 = vmul.f32 %v1115, 0.05448869
  %v1148 = vmul.f32 %v1116, 0.05448869
  %v1149 = vmul.f32 %v1117, 0.05448869
  %v1150 = vadd.f32 %v1054, %v1118
  %v1151 = vadd.f32 %v1055, %v1119
  %v1152 = vadd.f32 %v1056, %v1120
  %v1153 = vadd.f32 %v1057, %v1121
  %v1154 = vadd.f32 %v1058, %v1122
  %v1155 = vadd.f32 %v1059, %v1123
  %v1156 = vadd.f32 %v1060, %v1124
  %v1157 = vadd.f32 %v1061, %v1125
  %v1158 = vadd.f32 %v1062, %v1126
  %v1159 = vadd.f32 %v1063, %v1127
  %v1160 = vadd.f32 %v1064, %v1128
  %v1161 = vadd.f32 %v1065, %v1129
  %v1162 = vadd.f32 %v1066, %v1130
  %v1163 = vadd.f32 %v1067, %v1131
  %v1164 = vadd.f32 %v1068, %v1132
  %v1165 = vadd.f32 %v1069, %v1133
  %v1166 = vadd.f32 %v1070, %v1134
  %v1167 = vadd.f32 %v1071, %v1135
  %v1168 = vadd.f32 %v1072, %v1136
  %v1169 = vadd.f32 %v1073, %v1137
  %v1170 = vadd.f32 %v1074, %v1138
  %v1171 = vadd.f32 %v1075, %v1139
  %v1172 = vadd.f32 %v1076, %v1140
  %v1173 = vadd.f32 %v1077, %v1141
  %v1174 = vadd.f32 %v1078, %v1142
  %v1175 = vadd.f32 %v1079, %v1143
  %v1176 = vadd.f32 %v1080, %v1144
  %v1177 = vadd.f32 %v1081, %v1145
  %v1178 = vadd.f32 %v1082, %v1146
  %v1179 = vadd.f32 %v1083, %v1147
  %v1180 = vadd.f32 %v1084, %v1148
  %v1181 = vadd.f32 %v1085, %v1149
  %v1182 = vmax.f32 %v1150, 0.0
  %v1183 = vmax.f32 %v1151, 0.0
  %v1184 = vmax.f32 %v1152, 0.0
  %v1185 = vmax.f32 %v1153, 0.0
  %v1186 = vmax.f32 %v1154, 0.0
  %v1187 = vmax.f32 %v1155, 0.0
  %v1188 = vmax.f32 %v1156, 0.0
  %v1189 = vmax.f32 %v1157, 0.0
  %v1190 = vmax.f32 %v1158, 0.0
  %v1191 = vmax.f32 %v1159, 0.0
  %v1192 = vmax.f32 %v1160, 0.0
  %v1193 = vmax.f32 %v1161, 0.0
  %v1194 = vmax.f32 %v1162, 0.0
  %v1195 = vmax.f32 %v1163, 0.0
  %v1196 = vmax.f32 %v1164, 0.0
  %v1197 = vmax.f32 %v1165, 0.0
  %v1198 = vmax.f32 %v1166, 0.0
  %v1199 = vmax.f32 %v1167, 0.0
  %v1200 = vmax.f32 %v1168, 0.0
  %v1201 = vmax.f32 %v1169, 0.0
  %v1202 = vmax.f32 %v1170, 0.0
  %v1203 = vmax.f32 %v1171, 0.0
  %v1204 = vmax.f32 %v1172, 0.0
  %v1205 = vmax.f32 %v1173, 0.0
  %v1206 = vmax.f32 %v1174, 0.0
  %v1207 = vmax.f32 %v1175, 0.0
  %v1208 = vmax.f32 %v1176, 0.0
  %v1209 = vmax.f32 %v1177, 0.0
  %v1210 = vmax.f32 %v1178, 0.0
  %v1211 = vmax.f32 %v1179, 0.0
  %v1212 = vmax.f32 %v1180, 0.0
  %v1213 = vmax.f32 %v1181, 0.0
  %v1214 = vmin.f32 %v1182, 1.0
  %v1215 = vmin.f32 %v1183, 1.0
  %v1216 = vmin.f32 %v1184, 1.0
  %v1217 = vmin.f32 %v1185, 1.0
  %v1218 = vmin.f32 %v1186, 1.0
  %v1219 = vmin.f32 %v1187, 1.0
  %v1220 = vmin.f32 %v1188, 1.0
  %v1221 = vmin.f32 %v1189, 1.0
  %v1222 = vmin.f32 %v1190, 1.0
  %v1223 = vmin.f32 %v1191, 1.0
  %v1224 = vmin.f32 %v1192, 1.0
  %v1225 = vmin.f32 %v1193, 1.0
  %v1226 = vmin.f32 %v1194, 1.0
  %v1227 = vmin.f32 %v1195, 1.0
  %v1228 = vmin.f32 %v1196, 1.0
  %v1229 = vmin.f32 %v1197, 1.0
  %v1230 = vmin.f32 %v1198, 1.0
  %v1231 = vmin.f32 %v1199, 1.0
  %v1232 = vmin.f32 %v1200, 1.0
  %v1233 = vmin.f32 %v1201, 1.0
  %v1234 = vmin.f32 %v1202, 1.0
  %v1235 = vmin.f32 %v1203, 1.0
  %v1236 = vmin.f32 %v1204, 1.0
  %v1237 = vmin.f32 %v1205, 1.0
  %v1238 = vmin.f32 %v1206, 1.0
  %v1239 = vmin.f32 %v1207, 1.0
  %v1240 = vmin.f32 %v1208, 1.0
  %v1241 = vmin.f32 %v1209, 1.0
  %v1242 = vmin.f32 %v1210, 1.0
  %v1243 = vmin.f32 %v1211, 1.0
  %v1244 = vmin.f32 %v1212, 1.0
  %v1245 = vmin.f32 %v1213, 1.0
  %1246 = vst.msk [vmem:[%s1] sm:$0xff] %vm684, %v1214
  %1247 = vst.msk [vmem:[%s1 + $0x8] sm:$0xff] %vm684, %v1215
  %1248 = vst.msk [vmem:[%s1 + $0x10] sm:$0xff] %vm684, %v1216
  %1249 = vst.msk [vmem:[%s1 + $0x18] sm:$0xff] %vm684, %v1217
  %1250 = vst.msk [vmem:[%s1 + $0x20] sm:$0xff] %vm684, %v1218
  %1251 = vst.msk [vmem:[%s1 + $0x28] sm:$0xff] %vm684, %v1219
  %1252 = vst.msk [vmem:[%s1 + $0x30] sm:$0xff] %vm684, %v1220
  %1253 = vst.msk [vmem:[%s1 + $0x38] sm:$0xff] %vm684, %v1221
  %1254 = vst.msk [vmem:[%s1 + $0x40] sm:$0xff] %vm684, %v1222
  %1255 = vst.msk [vmem:[%s1 + $0x48] sm:$0xff] %vm684, %v1223
  %1256 = vst.msk [vmem:[%s1 + $0x50] sm:$0xff] %vm684, %v1224
  %1257 = vst.msk [vmem:[%s1 + $0x58] sm:$0xff] %vm684, %v1225
  %1258 = vst.msk [vmem:[%s1 + $0x60] sm:$0xff] %vm684, %v1226
  %1259 = vst.msk [vmem:[%s1 + $0x68] sm:$0xff] %vm684, %v1227
  %1260 = vst.msk [vmem:[%s1 + $0x70] sm:$0xff] %vm684, %v1228
  %1261 = vst.msk [vmem:[%s1 + $0x78] sm:$0xff] %vm684, %v1229
  %1262 = vst.msk [vmem:[%s1 + $0x80] sm:$0xff] %vm684, %v1230
  %1263 = vst.msk [vmem:[%s1 + $0x88] sm:$0xff] %vm684, %v1231
  %1264 = vst.msk [vmem:[%s1 + $0x90] sm:$0xff] %vm684, %v1232
  %1265 = vst.msk [vmem:[%s1 + $0x98] sm:$0xff] %vm684, %v1233
  %1266 = vst.msk [vmem:[%s1 + $0xa0] sm:$0xff] %vm684, %v1234
  %1267 = vst.msk [vmem:[%s1 + $0xa8] sm:$0xff] %vm684, %v1235
  %1268 = vst.msk [vmem:[%s1 + $0xb0] sm:$0xff] %vm684, %v1236
  %1269 = vst.msk [vmem:[%s1 + $0xb8] sm:$0xff] %vm684, %v1237
  %1270 = vst.msk [vmem:[%s1 + $0xc0] sm:$0xff] %vm684, %v1238
  %1271 = vst.msk [vmem:[%s1 + $0xc8] sm:$0xff] %vm684, %v1239
  %1272 = vst.msk [vmem:[%s1 + $0xd0] sm:$0xff] %vm684, %v1240
  %1273 = vst.msk [vmem:[%s1 + $0xd8] sm:$0xff] %vm684, %v1241
  %1274 = vst.msk [vmem:[%s1 + $0xe0] sm:$0xff] %vm684, %v1242
  %1275 = vst.msk [vmem:[%s1 + $0xe8] sm:$0xff] %vm684, %v1243
  %1276 = vst.msk [vmem:[%s1 + $0xf0] sm:$0xff] %vm684, %v1244
  %1277 = vst.msk [vmem:[%s1 + $0xf8] sm:$0xff] %vm684, %v1245
  // Predicated region
  $region6: #{tpu_custom_call.1} parent=0 // pred_check
    _
  $region7: #{tpu_custom_call.1} parent=0 // pred_check_branch
    %1279 = sbr.rel (0) target = $region9
  $region8: #{tpu_custom_call.1} parent=0 // pred_region
    _
  $region9: #{tpu_custom_call.1} parent=0 // pred_fallthru
    _
  // Predicated region
  $region10: #{tpu_custom_call.1} parent=0 // pred_check
    _
  $region11: #{tpu_custom_call.1} parent=0 // pred_check_branch
    %1281 = sbr.rel (0) target = $region13
  $region12: #{tpu_custom_call.1} parent=0 // pred_region
    _
  $region13: #{tpu_custom_call.1} parent=0 // pred_fallthru
    _

</llo_original>
